<compile_context>
chip_gen: v5e
topology: v5e:2x2
jax: 0.10.0
libtpu: 0.0.40
codegen_flags: <defaults>
</compile_context>

<pallas_src>
import jax
import jax.numpy as jnp
import numpy as np
from jax import lax
from jax.experimental import pallas as pl
from jax.experimental.pallas import tpu as pltpu


def _round_up(x: int, m: int) -> int:
    return ((x + m - 1) // m) * m


def _saw_kernel(idx_ref,    # VMEM (1, W_pad, P) int32 in [-1, S-1], per-batch (reused)
                text_ref,   # VMEM (1, S, D)      text slab, per-batch (reused)
                w_ref,      # VMEM (1, D) f32     attention weight vector (resident)
                bias_ref,   # SMEM (1, 1) f32     attention bias (scalar path)
                out_ref):   # VMEM (1, w_tile, D)
    _, seq, _ = text_ref.shape
    _, w_tile, _ = out_ref.shape
    pieces = idx_ref.shape[2]

    wt = pl.program_id(1)
    w_base = pl.multiple_of(wt * w_tile, w_tile)

    text = text_ref[0]                                   # (S, D), native dtype
    wvec = w_ref[...].astype(jnp.float32)                # (1, D)
    bias = bias_ref[0, 0]                                # scalar (SMEM)

    idx_tile = idx_ref[0, pl.ds(w_base, w_tile), :]      # (w_tile, P) int32
    iota_s = lax.broadcasted_iota(jnp.int32, (w_tile, seq), 1)

    # ---- per-piece one-hot MXU gather + fused Linear(D -> 1) logits ------------
    g, ml, msk = [], [], []
    for p in range(pieces):                              # P is small & static
        idx_p = idx_tile[:, p:p + 1]                     # (w_tile, 1)
        mask_p = (idx_p >= 0).astype(jnp.float32)        # (w_tile, 1), pre-relu mask
        # padding (-1) rows produce an all-zero one-hot -> gathered row is exactly 0
        onehot_p = (idx_p == iota_s).astype(text_ref.dtype)          # (w_tile, S)
        g_p = jnp.dot(onehot_p, text,                                # MXU gather
                      preferred_element_type=jnp.float32,
                      precision=jax.lax.Precision.HIGHEST)           # (w_tile, D) f32
        logit_p = jnp.sum(g_p * wvec, axis=-1, keepdims=True) + bias  # (w_tile, 1)
        g.append(g_p)
        msk.append(mask_p)
        ml.append(logit_p * mask_p)                      # old-AllenNLP: logits * mask

    # ---- masked softmax over pieces; everything stays (w_tile, 1) --------------
    m = ml[0]
    for p in range(1, pieces):
        m = jnp.maximum(m, ml[p])
    e = [jnp.exp(ml[p] - m) for p in range(pieces)]      # EUP
    sum_e = e[0]
    for p in range(1, pieces):
        sum_e = sum_e + e[p]
    inv_sum_e = pl.reciprocal(sum_e, approx=True)        # EUP slot (free-ish)
    probs = [e[p] * inv_sum_e * msk[p] for p in range(pieces)]
    denom = probs[0]
    for p in range(1, pieces):
        denom = denom + probs[p]
    inv_denom = pl.reciprocal(denom + 1e-13, approx=True)

    # ---- weighted sum over pieces: P full-width VPU mul-adds on (w_tile, D) ----
    acc = (probs[0] * inv_denom) * g[0]
    for p in range(1, pieces):
        acc = acc + (probs[p] * inv_denom) * g[p]
    out_ref[0] = acc.astype(out_ref.dtype)


def _pick_w_tile(W: int, B: int) -> int:
    t = min(64, _round_up(W, 8))
    # v7x megacore: keep >= 2 grid steps along a parallel axis when B alone can't.
    if B < 2 and _round_up(W, t) // t < 2 and t > 8:
        t = max(8, _round_up((W + 1) // 2, 8))
    return t


def _vmem_limit_bytes(S, D, W_pad, P, w_tile, text_dtype, out_dtype):
    lane = 128
    tb = jnp.dtype(text_dtype).itemsize
    ob = jnp.dtype(out_dtype).itemsize
    d_pad = _round_up(D, lane)
    s_pad = _round_up(S, lane)
    # double-buffered pipeline blocks
    blocks = 2 * (S * d_pad * tb              # per-batch text slab
                  + W_pad * lane * 4          # index block (P pads to one lane group)
                  + w_tile * d_pad * ob       # output tile
                  + 8 * d_pad * 4)            # weight vector
    # compiler-managed temporaries: one-hot tiles, gathered rows, (w_tile,1) logits
    temps = P * w_tile * (s_pad * tb + d_pad * 4) + P * 8 * lane * 4
    est = int((blocks + temps) * 1.25) + (4 << 20)
    return max(16 << 20, min(est, 64 << 20))  # floor for safety, cap at v7x physical


def self_attentive_word_extractor(text_tensor,
                                  contextualized_embedding,   # accepted, unused
                                  word_indices,
                                  attn_weight,
                                  attn_bias,
                                  word_mask=None,
                                  word_indices_mask=None,
                                  w_tile=None):
    """Pallas-backed forward pass of SelfAttentiveWordExtractor."""
    # contextualized_embedding / word_mask never influence the reference output.
    del contextualized_embedding, word_mask

    B, S, D = text_tensor.shape
    _, W, P = word_indices.shape

    if w_tile is None:
        w_tile = _pick_w_tile(W, B)
    else:
        w_tile = max(8, _round_up(int(w_tile), 8))
    W_pad = _round_up(W, w_tile)
    n_wt = W_pad // w_tile

    # Clip indices: keep -1 as the padding sentinel (drives the in-kernel mask);
    # clamp the upper end so the one-hot gather never addresses past the slab.
    idx = jnp.clip(word_indices.astype(jnp.int32), -1, S - 1)
    if W_pad != W:
        idx = jnp.pad(idx, ((0, 0), (0, W_pad - W), (0, 0)), constant_values=-1)

    w2d = jnp.asarray(attn_weight, jnp.float32).reshape(1, D)
    b2d = jnp.asarray(attn_bias, jnp.float32).reshape(1, 1)

    vmem_limit = _vmem_limit_bytes(S, D, W_pad, P, w_tile,
                                   text_tensor.dtype, text_tensor.dtype)

    out = pl.pallas_call(
        _saw_kernel,
        out_shape=jax.ShapeDtypeStruct((B, W_pad, D), text_tensor.dtype),
        grid=(B, n_wt),
        in_specs=[
            # per-batch index block, reused across all word tiles of that batch
            pl.BlockSpec((1, W_pad, P), lambda b, wt: (b, 0, 0)),
            # per-batch text slab, reused across all word tiles of that batch
            pl.BlockSpec((1, S, D), lambda b, wt: (b, 0, 0)),
            # attention weight vector: resident (constant block index)
            pl.BlockSpec((1, D), lambda b, wt: (0, 0)),
            # attention bias: scalar path
            pl.BlockSpec(memory_space=pltpu.MemorySpace.SMEM),
        ],
        out_specs=pl.BlockSpec((1, w_tile, D), lambda b, wt: (b, wt, 0)),
        compiler_params=pltpu.CompilerParams(
            dimension_semantics=("parallel", "parallel"),
            vmem_limit_bytes=vmem_limit,
        ),
    )(idx, text_tensor, w2d, b2d)

    if W_pad != W:
        out = out[:, :W, :]
    if word_indices_mask is not None:
        out = out * word_indices_mask.astype(out.dtype)[..., None]
    return out


def _reference(text, word_indices, attn_weight, attn_bias, word_indices_mask=None):
    """Pure-JAX oracle reproducing the PyTorch module's forward."""
    B, S, D = text.shape
    _, W, P = word_indices.shape
    logits = jnp.einsum("bsd,d->bs", text, attn_weight) + attn_bias      # (B, S)
    mask = (word_indices >= 0).astype(jnp.float32)                       # (B, W, P)
    idx = jnp.maximum(word_indices, 0).reshape(B, W * P)
    emb = jnp.take_along_axis(text, idx[..., None], axis=1).reshape(B, W, P, D)
    lgt = jnp.take_along_axis(logits, idx, axis=1).reshape(B, W, P)
    ml = lgt * mask
    p = jax.nn.softmax(ml, axis=-1) * mask
    wts = p / (jnp.sum(p, axis=-1, keepdims=True) + 1e-13)
    out = jnp.einsum("bwp,bwpd->bwd", wts, emb)
    if word_indices_mask is not None:
        out = out * word_indices_mask.astype(out.dtype)[..., None]
    return out


if __name__ == "__main__":
    B, S, D = 2, 48, 128     # batch, wordpiece sequence length, hidden dim
    W, P = 16, 4             # words per example, pieces per word
    key = jax.random.PRNGKey(0)
    k1, k2, k3 = jax.random.split(key, 3)

    text = jax.random.normal(k1, (B, S, D), dtype=jnp.float32)
    ctx_emb = jax.random.normal(k2, (B, S, D), dtype=jnp.float32)        # unused
    attn_weight = 0.1 * jax.random.normal(k3, (D,), dtype=jnp.float32)
    attn_bias = jnp.float32(0.05)

    # wordpiece indices: word w covers pieces [2w, 2w + len) with len in 1..P,
    # padded with -1; one word is fully padded to exercise the all-masked path.
    starts = jnp.arange(W, dtype=jnp.int32) * 2
    lengths = (jnp.arange(W, dtype=jnp.int32) % P) + 1
    piece_range = jnp.arange(P, dtype=jnp.int32)
    wi = jnp.where(piece_range[None, :] < lengths[:, None],
                   starts[:, None] + piece_range[None, :], -1)
    wi = wi.at[W - 2].set(-1)
    wi = jnp.clip(wi, -1, S - 1)
    word_indices = jnp.broadcast_to(wi[None], (B, W, P)).astype(jnp.int32)

    word_indices_mask = jnp.ones((B, W), dtype=jnp.float32).at[:, -1].set(0.0)

    run = jax.jit(lambda t, c, i, w, b, m: self_attentive_word_extractor(
        t, c, i, w, b, word_indices_mask=m))
    out = jax.block_until_ready(
        run(text, ctx_emb, word_indices, attn_weight, attn_bias, word_indices_mask))

    ref = _reference(text, word_indices, attn_weight, attn_bias, word_indices_mask)
    np.testing.assert_allclose(np.asarray(out), np.asarray(ref), rtol=2e-2, atol=5e-3)

    print("KERNEL_OK")
</pallas_src>

<mosaic_0001>
module attributes {stable_mosaic.version = 11 : i64} {
  func.func @_saw_kernel(%arg0: i32, %arg1: i32, %arg2: memref<1x16x4xi32, #tpu.memory_space<vmem>>, %arg3: memref<1x48x128xf32, #tpu.memory_space<vmem>>, %arg4: memref<1x128xf32, #tpu.memory_space<vmem>>, %arg5: memref<1x1xf32, #tpu.memory_space<smem>>, %arg6: memref<1x16x128xf32, #tpu.memory_space<vmem>>) attributes {dimension_semantics = [#tpu.dimension_semantics<parallel>, #tpu.dimension_semantics<parallel>], iteration_bounds = array<i64: 2, 1>, scalar_prefetch = 0 : i64, scratch_operands = 0 : i64, tpu.core_type = #tpu.core_type<tc>, window_params = [{transform_indices = @transform_0, window_bounds = array<i64: 1, 16, 4>}, {transform_indices = @transform_1, window_bounds = array<i64: 1, 48, 128>}, {pipeline_mode = #tpu.pipeline_mode<synchronous>, transform_indices = @transform_2, window_bounds = array<i64: 1, 128>}, {transform_indices = @transform_3, window_bounds = array<i64: 1, 1>}, {transform_indices = @transform_4, window_bounds = array<i64: 1, 16, 128>}]} {
    %c16_i32 = arith.constant 16 : i32
    %0 = arith.muli %arg1, %c16_i32 : i32
    %1 = tpu.assume_multiple %0, 16 : i32
    %c0 = arith.constant 0 : index
    %c0_0 = arith.constant 0 : index
    %c0_1 = arith.constant 0 : index
    %2 = vector.load %arg3[%c0, %c0_0, %c0_1] : memref<1x48x128xf32, #tpu.memory_space<vmem>>, vector<1x48x128xf32>
    %3 = vector.shape_cast %2 : vector<1x48x128xf32> to vector<48x128xf32>
    %c0_2 = arith.constant 0 : index
    %c0_3 = arith.constant 0 : index
    %4 = vector.load %arg4[%c0_2, %c0_3] : memref<1x128xf32, #tpu.memory_space<vmem>>, vector<1x128xf32>
    %c0_4 = arith.constant 0 : index
    %c0_5 = arith.constant 0 : index
    %5 = memref.load %arg5[%c0_4, %c0_5] : memref<1x1xf32, #tpu.memory_space<smem>>
    %c0_6 = arith.constant 0 : index
    %6 = arith.index_cast %1 : i32 to index
    %c0_7 = arith.constant 0 : index
    %7 = vector.load %arg2[%c0_6, %6, %c0_7] : memref<1x16x4xi32, #tpu.memory_space<vmem>>, vector<1x16x4xi32>
    %8 = vector.shape_cast %7 : vector<1x16x4xi32> to vector<16x4xi32>
    %9 = tpu.iota {dimensions = array<i32: 1>} : vector<16x48xi32>
    %10 = vector.extract_strided_slice %8 {offsets = [0, 0], sizes = [16, 1], strides = [1, 1]} : vector<16x4xi32> to vector<16x1xi32>
    %c0_i32 = arith.constant 0 : i32
    %11 = vector.broadcast %c0_i32 : i32 to vector<16x1xi32>
    %12 = arith.cmpi sge, %10, %11 : vector<16x1xi32>
    %13 = arith.extui %12 : vector<16x1xi1> to vector<16x1xi32>
    %14 = arith.sitofp %13 : vector<16x1xi32> to vector<16x1xf32>
    %15 = vector.broadcast %10 : vector<16x1xi32> to vector<16x48xi32>
    %16 = arith.cmpi eq, %15, %9 : vector<16x48xi32>
    %17 = arith.extui %16 : vector<16x48xi1> to vector<16x48xi32>
    %18 = arith.sitofp %17 : vector<16x48xi32> to vector<16x48xf32>
    %cst = arith.constant dense<0.000000e+00> : vector<16x128xf32>
    %19 = tpu.matmul %18, %3, %cst {dimension_numbers = #tpu.dot_dimension_numbers<[1], [0], [0], [1], [0, 0, 1, 1], [], []>, precision = #tpu.contract_precision<fp32>} : vector<16x48xf32>, vector<48x128xf32>, vector<16x128xf32> -> vector<16x128xf32>
    %20 = vector.broadcast %4 : vector<1x128xf32> to vector<16x128xf32>
    %21 = arith.mulf %19, %20 : vector<16x128xf32>
    %cst_8 = arith.constant dense<0.000000e+00> : vector<16xf32>
    %22 = vector.multi_reduction <add>, %21, %cst_8 [1] : vector<16x128xf32> to vector<16xf32>
    %23 = vector.shape_cast %22 : vector<16xf32> to vector<16x1xf32>
    %24 = vector.broadcast %5 : f32 to vector<16x1xf32>
    %25 = arith.addf %23, %24 : vector<16x1xf32>
    %26 = arith.mulf %25, %14 : vector<16x1xf32>
    %27 = vector.extract_strided_slice %8 {offsets = [0, 1], sizes = [16, 1], strides = [1, 1]} : vector<16x4xi32> to vector<16x1xi32>
    %c0_i32_9 = arith.constant 0 : i32
    %28 = vector.broadcast %c0_i32_9 : i32 to vector<16x1xi32>
    %29 = arith.cmpi sge, %27, %28 : vector<16x1xi32>
    %30 = arith.extui %29 : vector<16x1xi1> to vector<16x1xi32>
    %31 = arith.sitofp %30 : vector<16x1xi32> to vector<16x1xf32>
    %32 = vector.broadcast %27 : vector<16x1xi32> to vector<16x48xi32>
    %33 = arith.cmpi eq, %32, %9 : vector<16x48xi32>
    %34 = arith.extui %33 : vector<16x48xi1> to vector<16x48xi32>
    %35 = arith.sitofp %34 : vector<16x48xi32> to vector<16x48xf32>
    %cst_10 = arith.constant dense<0.000000e+00> : vector<16x128xf32>
    %36 = tpu.matmul %35, %3, %cst_10 {dimension_numbers = #tpu.dot_dimension_numbers<[1], [0], [0], [1], [0, 0, 1, 1], [], []>, precision = #tpu.contract_precision<fp32>} : vector<16x48xf32>, vector<48x128xf32>, vector<16x128xf32> -> vector<16x128xf32>
    %37 = vector.broadcast %4 : vector<1x128xf32> to vector<16x128xf32>
    %38 = arith.mulf %36, %37 : vector<16x128xf32>
    %cst_11 = arith.constant dense<0.000000e+00> : vector<16xf32>
    %39 = vector.multi_reduction <add>, %38, %cst_11 [1] : vector<16x128xf32> to vector<16xf32>
    %40 = vector.shape_cast %39 : vector<16xf32> to vector<16x1xf32>
    %41 = vector.broadcast %5 : f32 to vector<16x1xf32>
    %42 = arith.addf %40, %41 : vector<16x1xf32>
    %43 = arith.mulf %42, %31 : vector<16x1xf32>
    %44 = vector.extract_strided_slice %8 {offsets = [0, 2], sizes = [16, 1], strides = [1, 1]} : vector<16x4xi32> to vector<16x1xi32>
    %c0_i32_12 = arith.constant 0 : i32
    %45 = vector.broadcast %c0_i32_12 : i32 to vector<16x1xi32>
    %46 = arith.cmpi sge, %44, %45 : vector<16x1xi32>
    %47 = arith.extui %46 : vector<16x1xi1> to vector<16x1xi32>
    %48 = arith.sitofp %47 : vector<16x1xi32> to vector<16x1xf32>
    %49 = vector.broadcast %44 : vector<16x1xi32> to vector<16x48xi32>
    %50 = arith.cmpi eq, %49, %9 : vector<16x48xi32>
    %51 = arith.extui %50 : vector<16x48xi1> to vector<16x48xi32>
    %52 = arith.sitofp %51 : vector<16x48xi32> to vector<16x48xf32>
    %cst_13 = arith.constant dense<0.000000e+00> : vector<16x128xf32>
    %53 = tpu.matmul %52, %3, %cst_13 {dimension_numbers = #tpu.dot_dimension_numbers<[1], [0], [0], [1], [0, 0, 1, 1], [], []>, precision = #tpu.contract_precision<fp32>} : vector<16x48xf32>, vector<48x128xf32>, vector<16x128xf32> -> vector<16x128xf32>
    %54 = vector.broadcast %4 : vector<1x128xf32> to vector<16x128xf32>
    %55 = arith.mulf %53, %54 : vector<16x128xf32>
    %cst_14 = arith.constant dense<0.000000e+00> : vector<16xf32>
    %56 = vector.multi_reduction <add>, %55, %cst_14 [1] : vector<16x128xf32> to vector<16xf32>
    %57 = vector.shape_cast %56 : vector<16xf32> to vector<16x1xf32>
    %58 = vector.broadcast %5 : f32 to vector<16x1xf32>
    %59 = arith.addf %57, %58 : vector<16x1xf32>
    %60 = arith.mulf %59, %48 : vector<16x1xf32>
    %61 = vector.extract_strided_slice %8 {offsets = [0, 3], sizes = [16, 1], strides = [1, 1]} : vector<16x4xi32> to vector<16x1xi32>
    %c0_i32_15 = arith.constant 0 : i32
    %62 = vector.broadcast %c0_i32_15 : i32 to vector<16x1xi32>
    %63 = arith.cmpi sge, %61, %62 : vector<16x1xi32>
    %64 = arith.extui %63 : vector<16x1xi1> to vector<16x1xi32>
    %65 = arith.sitofp %64 : vector<16x1xi32> to vector<16x1xf32>
    %66 = vector.broadcast %61 : vector<16x1xi32> to vector<16x48xi32>
    %67 = arith.cmpi eq, %66, %9 : vector<16x48xi32>
    %68 = arith.extui %67 : vector<16x48xi1> to vector<16x48xi32>
    %69 = arith.sitofp %68 : vector<16x48xi32> to vector<16x48xf32>
    %cst_16 = arith.constant dense<0.000000e+00> : vector<16x128xf32>
    %70 = tpu.matmul %69, %3, %cst_16 {dimension_numbers = #tpu.dot_dimension_numbers<[1], [0], [0], [1], [0, 0, 1, 1], [], []>, precision = #tpu.contract_precision<fp32>} : vector<16x48xf32>, vector<48x128xf32>, vector<16x128xf32> -> vector<16x128xf32>
    %71 = vector.broadcast %4 : vector<1x128xf32> to vector<16x128xf32>
    %72 = arith.mulf %70, %71 : vector<16x128xf32>
    %cst_17 = arith.constant dense<0.000000e+00> : vector<16xf32>
    %73 = vector.multi_reduction <add>, %72, %cst_17 [1] : vector<16x128xf32> to vector<16xf32>
    %74 = vector.shape_cast %73 : vector<16xf32> to vector<16x1xf32>
    %75 = vector.broadcast %5 : f32 to vector<16x1xf32>
    %76 = arith.addf %74, %75 : vector<16x1xf32>
    %77 = arith.mulf %76, %65 : vector<16x1xf32>
    %78 = arith.maximumf %26, %43 : vector<16x1xf32>
    %79 = arith.maximumf %78, %60 : vector<16x1xf32>
    %80 = arith.maximumf %79, %77 : vector<16x1xf32>
    %81 = arith.subf %26, %80 : vector<16x1xf32>
    %82 = math.exp %81 : vector<16x1xf32>
    %83 = arith.subf %43, %80 : vector<16x1xf32>
    %84 = math.exp %83 : vector<16x1xf32>
    %85 = arith.subf %60, %80 : vector<16x1xf32>
    %86 = math.exp %85 : vector<16x1xf32>
    %87 = arith.subf %77, %80 : vector<16x1xf32>
    %88 = math.exp %87 : vector<16x1xf32>
    %89 = arith.addf %82, %84 : vector<16x1xf32>
    %90 = arith.addf %89, %86 : vector<16x1xf32>
    %91 = arith.addf %90, %88 : vector<16x1xf32>
    %92 = tpu.reciprocal %91 {approx = true} : vector<16x1xf32> -> vector<16x1xf32>
    %93 = arith.mulf %82, %92 : vector<16x1xf32>
    %94 = arith.mulf %93, %14 : vector<16x1xf32>
    %95 = arith.mulf %84, %92 : vector<16x1xf32>
    %96 = arith.mulf %95, %31 : vector<16x1xf32>
    %97 = arith.mulf %86, %92 : vector<16x1xf32>
    %98 = arith.mulf %97, %48 : vector<16x1xf32>
    %99 = arith.mulf %88, %92 : vector<16x1xf32>
    %100 = arith.mulf %99, %65 : vector<16x1xf32>
    %101 = arith.addf %94, %96 : vector<16x1xf32>
    %102 = arith.addf %101, %98 : vector<16x1xf32>
    %103 = arith.addf %102, %100 : vector<16x1xf32>
    %cst_18 = arith.constant 9.99999982E-14 : f32
    %104 = vector.broadcast %cst_18 : f32 to vector<16x1xf32>
    %105 = arith.addf %103, %104 : vector<16x1xf32>
    %106 = tpu.reciprocal %105 {approx = true} : vector<16x1xf32> -> vector<16x1xf32>
    %107 = arith.mulf %94, %106 : vector<16x1xf32>
    %108 = vector.broadcast %107 : vector<16x1xf32> to vector<16x128xf32>
    %109 = arith.mulf %108, %19 : vector<16x128xf32>
    %110 = arith.mulf %96, %106 : vector<16x1xf32>
    %111 = vector.broadcast %110 : vector<16x1xf32> to vector<16x128xf32>
    %112 = arith.mulf %111, %36 : vector<16x128xf32>
    %113 = arith.addf %109, %112 : vector<16x128xf32>
    %114 = arith.mulf %98, %106 : vector<16x1xf32>
    %115 = vector.broadcast %114 : vector<16x1xf32> to vector<16x128xf32>
    %116 = arith.mulf %115, %53 : vector<16x128xf32>
    %117 = arith.addf %113, %116 : vector<16x128xf32>
    %118 = arith.mulf %100, %106 : vector<16x1xf32>
    %119 = vector.broadcast %118 : vector<16x1xf32> to vector<16x128xf32>
    %120 = arith.mulf %119, %70 : vector<16x128xf32>
    %121 = arith.addf %117, %120 : vector<16x128xf32>
    %c0_19 = arith.constant 0 : index
    %c0_20 = arith.constant 0 : index
    %c0_21 = arith.constant 0 : index
    %122 = vector.load %arg6[%c0_19, %c0_20, %c0_21] : memref<1x16x128xf32, #tpu.memory_space<vmem>>, vector<1x16x128xf32>
    %123 = vector.shape_cast %122 : vector<1x16x128xf32> to vector<16x128xf32>
    %124 = vector.shape_cast %121 : vector<16x128xf32> to vector<1x16x128xf32>
    tpu.vector_store %arg6[%c0_19, %c0_20, %c0_21], %124 {strides = array<i32>} : memref<1x16x128xf32, #tpu.memory_space<vmem>>, vector<1x16x128xf32>,
    return
  }
  func.func @transform_0(%arg0: i32, %arg1: i32) -> (i32, i32, i32) {
    %c0_i32 = arith.constant 0 : i32
    %c0_i32_0 = arith.constant 0 : i32
    %c0_i32_1 = arith.constant 0 : i32
    return %arg0, %c0_i32, %c0_i32_0 : i32, i32, i32
  }
  func.func @transform_1(%arg0: i32, %arg1: i32) -> (i32, i32, i32) {
    %c0_i32 = arith.constant 0 : i32
    %c0_i32_0 = arith.constant 0 : i32
    %c0_i32_1 = arith.constant 0 : i32
    return %arg0, %c0_i32, %c0_i32_0 : i32, i32, i32
  }
  func.func @transform_2(%arg0: i32, %arg1: i32) -> (i32, i32) {
    %c0_i32 = arith.constant 0 : i32
    %c0_i32_0 = arith.constant 0 : i32
    %c0_i32_1 = arith.constant 0 : i32
    return %c0_i32, %c0_i32_0 : i32, i32
  }
  func.func @transform_3(%arg0: i32, %arg1: i32) -> (i32, i32) {
    %c0_i32 = arith.constant 0 : i32
    %c0_i32_0 = arith.constant 0 : i32
    %c0_i32_1 = arith.constant 0 : i32
    return %c0_i32, %c0_i32_0 : i32, i32
  }
  func.func @transform_4(%arg0: i32, %arg1: i32) -> (i32, i32, i32) {
    %c0_i32 = arith.constant 0 : i32
    %c0_i32_0 = arith.constant 0 : i32
    return %arg0, %arg1, %c0_i32 : i32, i32, i32
  }
}

</mosaic_0001>

<llo_original>
// kernel: _lambda_.1
$region0: #{_lambda_.1}
  #allocation0 [shape = 'u32[]', space=smem, size = 0x4, offset = 0x4, fixed_abs, tag = 'smem constant byte address 0x4 - core index']
  #allocation1 [shape = 'u32[72,128]{1,0:T(1,128)}', space=vmem, size = 0x9000, scoped, tag = 'internal scratch']
  #allocation2 [shape = 'f32[1,1]{1,0:T(1,128)S(6)}', space=smem, size = 0x200, scoped, tag = 'scoped memory for _lambda_.1']
  %s0 = inlined_call_operand.vmem [shape: s32[2,16,4], index: 0, kind: input, shape index: {}]
  %s1 = inlined_call_operand.vmem [shape: f32[2,48,128], index: 1, kind: input, shape index: {}]
  %s2 = inlined_call_operand.vmem [shape: f32[1,128], index: 2, kind: input, shape index: {}]
  %s3 = inlined_call_operand.<no memory space> [shape: f32[1,1], index: 3, kind: input, shape index: {}]
  %s4 = inlined_call_operand.vmem [shape: f32[2,16,128], index: 4, kind: output, shape index: {}]
  %s5 = sld [smem:[#allocation0]]
  $region49: #{_lambda_.1} parent=0
    _
  %s7 = ssub.s32 1, %s5
  %s8 = scalar_select 0, %s7, %s5
  %9 = sst [smem:[#allocation2]] %s3
  loop: start=0, step=1, limit=4
  $region2: #{_lambda_.1} parent=0 // loop_pre_header
    _
  $region3: #{_lambda_.1} parent=0 // loop_header
    %s11 = sphi 0, %s15
    %p12 = scmp.ge.s32.totalorder %s11, 4
    %s18 = sphi 0, %s30
    %s19 = sphi 0, %s26
    %s20 = sphi 0, %s18
    %s21 = sphi 0, %s19
    %s22 = sphi 0, %s20
    %s23 = sphi 0, %s21
    %s33 = sphi 0, %s35
    %s36 = sphi 0, %s33
    %s37 = sphi 0, %s36
    %s53 = sphi 0, %s37
    %s59 = sphi 0, %s61
    %s62 = sphi 0, %s59
    %s63 = sphi 0, %s62
    %s79 = sphi 0, %s63
    %s83 = sphi 0, %s83
    %s85 = sphi 0, %s83
    %s86 = sphi 0, %s85
    %s100 = sphi 0, %s86
    %s104 = sphi 0, %s104
    %s106 = sphi 0, %s104
    %s107 = sphi 0, %s106
    %s121 = sphi 0, %s107
    %s129 = sphi 0, %s131
    %s132 = sphi 0, %s129
    %s133 = sphi 0, %s132
    %s149 = sphi 0, %s133
  $region4: #{_lambda_.1} parent=0 // loop_header_branch
    %14 = sbr.rel (%p12) target = $region8
  $region5: #{_lambda_.1} parent=0 // loop_body
    %s16 = ssub.s32 %s11, 1
    %s17 = ssub.s32 %s11, 2
    %s24 = sadd.s32 1, %s19
    %p25 = scmp.ge.s32.totalorder %s24, 1
    %s26 = scalar_select %p25, 0, %s24
    %s27 = sadd.s32 1, %s18
    %s28 = scalar_select %p25, %s27, %s18
    %p29 = scmp.ge.s32.totalorder %s28, 2
    %s30 = scalar_select %p29, 0, %s28
    %s31 = ssub.s32 %s18, %s30
    %p32 = scmp.eq.s32.totalorder %s31, 0
    %s34 = sadd.s32 %s33, 1
    %s35 = scalar_select %p32, %s33, %s34
    %p38 = pneg %p32
    %p39 = scmp.eq.s32.totalorder %s11, 1
    %p40 = por %p38, %p39
    %p41 = scmp.ne.s32.totalorder %s33, %s36
    %p42 = scmp.eq.s32.totalorder %s11, 0
    %p43 = por %p41, %p42
    %p44 = scmp.ne.s32.totalorder %s33, %s36
    %p45 = scmp.eq.s32.totalorder %s16, 1
    %p46 = por %p44, %p45
    %p47 = scmp.ne.s32.totalorder %s36, %s37
    %p48 = scmp.eq.s32.totalorder %s16, 0
    %p49 = por %p47, %p48
    %p50 = scmp.ne.s32.totalorder %s36, %s37
    %p51 = scmp.eq.s32.totalorder %s17, 1
    %p52 = por %p50, %p51
    %p54 = scmp.ne.s32.totalorder %s37, %s53
    %p55 = scmp.eq.s32.totalorder %s17, 0
    %p56 = por %p54, %p55
    %s57 = ssub.s32 %s18, %s30
    %p58 = scmp.eq.s32.totalorder %s57, 0
    %s60 = sadd.s32 %s59, 1
    %s61 = scalar_select %p58, %s59, %s60
    %p64 = pneg %p58
    %p65 = scmp.eq.s32.totalorder %s11, 1
    %p66 = por %p64, %p65
    %p67 = scmp.ne.s32.totalorder %s59, %s62
    %p68 = scmp.eq.s32.totalorder %s11, 0
    %p69 = por %p67, %p68
    %p70 = scmp.ne.s32.totalorder %s59, %s62
    %p71 = scmp.eq.s32.totalorder %s16, 1
    %p72 = por %p70, %p71
    %p73 = scmp.ne.s32.totalorder %s62, %s63
    %p74 = scmp.eq.s32.totalorder %s16, 0
    %p75 = por %p73, %p74
    %p76 = scmp.ne.s32.totalorder %s62, %s63
    %p77 = scmp.eq.s32.totalorder %s17, 1
    %p78 = por %p76, %p77
    %p80 = scmp.ne.s32.totalorder %s63, %s79
    %p81 = scmp.eq.s32.totalorder %s17, 0
    %p82 = por %p80, %p81
    %s84 = sadd.s32 %s83, 1
    %p87 = scmp.eq.s32.totalorder %s11, 1
    %p88 = scmp.ne.s32.totalorder %s83, %s85
    %p89 = scmp.eq.s32.totalorder %s11, 0
    %p90 = por %p88, %p89
    %p91 = scmp.ne.s32.totalorder %s83, %s85
    %p92 = scmp.eq.s32.totalorder %s16, 1
    %p93 = por %p91, %p92
    %p94 = scmp.ne.s32.totalorder %s85, %s86
    %p95 = scmp.eq.s32.totalorder %s16, 0
    %p96 = por %p94, %p95
    %p97 = scmp.ne.s32.totalorder %s85, %s86
    %p98 = scmp.eq.s32.totalorder %s17, 1
    %p99 = por %p97, %p98
    %p101 = scmp.ne.s32.totalorder %s86, %s100
    %p102 = scmp.eq.s32.totalorder %s17, 0
    %p103 = por %p101, %p102
    %s105 = sadd.s32 %s104, 1
    %p108 = scmp.eq.s32.totalorder %s11, 1
    %p109 = scmp.ne.s32.totalorder %s104, %s106
    %p110 = scmp.eq.s32.totalorder %s11, 0
    %p111 = por %p109, %p110
    %p112 = scmp.ne.s32.totalorder %s104, %s106
    %p113 = scmp.eq.s32.totalorder %s16, 1
    %p114 = por %p112, %p113
    %p115 = scmp.ne.s32.totalorder %s106, %s107
    %p116 = scmp.eq.s32.totalorder %s16, 0
    %p117 = por %p115, %p116
    %p118 = scmp.ne.s32.totalorder %s106, %s107
    %p119 = scmp.eq.s32.totalorder %s17, 1
    %p120 = por %p118, %p119
    %p122 = scmp.ne.s32.totalorder %s107, %s121
    %p123 = scmp.eq.s32.totalorder %s17, 0
    %p124 = por %p122, %p123
    %s125 = ssub.s32 %s18, %s30
    %s126 = ssub.s32 %s19, %s26
    %s127 = sor.u32 %s125, %s126
    %p128 = scmp.eq.s32.totalorder %s127, 0
    %s130 = sadd.s32 %s129, 1
    %s131 = scalar_select %p128, %s129, %s130
    %p134 = pneg %p128
    %p135 = scmp.eq.s32.totalorder %s11, 1
    %p136 = por %p134, %p135
    %p137 = scmp.ne.s32.totalorder %s129, %s132
    %p138 = scmp.eq.s32.totalorder %s11, 0
    %p139 = por %p137, %p138
    %p140 = scmp.ne.s32.totalorder %s129, %s132
    %p141 = scmp.eq.s32.totalorder %s16, 1
    %p142 = por %p140, %p141
    %p143 = scmp.ne.s32.totalorder %s132, %s133
    %p144 = scmp.eq.s32.totalorder %s16, 0
    %p145 = por %p143, %p144
    %p146 = scmp.ne.s32.totalorder %s132, %s133
    %p147 = scmp.eq.s32.totalorder %s17, 1
    %p148 = por %p146, %p147
    %p150 = scmp.ne.s32.totalorder %s133, %s149
    %p151 = scmp.eq.s32.totalorder %s17, 0
    %p152 = por %p150, %p151
    %p153 = scmp.le.s32.totalorder 1, %s11
    %p154 = scmp.lt.s32.totalorder %s11, 3
    %p155 = pnand %p153, %p154
    %p156 = pneg %p155
    // Predicated region
    $region9: #{_lambda_.1} parent=5 // pred_check
      _
    $region10: #{_lambda_.1} parent=5 // pred_check_branch
      %158 = sbr.rel (%p155) target = $region12
    $region11: #{_lambda_.1} parent=5 // pred_region
      %s159 = ssub.s32 %s11, 1
      // Predicated region
      $region13: #{_lambda_.1} parent=11 // pred_check
        %p160 = pneg %p96
      $region14: #{_lambda_.1} parent=11 // pred_check_branch
        %162 = sbr.rel (%p160) target = $region16
      $region15: #{_lambda_.1} parent=11 // pred_region
        _
      $region16: #{_lambda_.1} parent=11 // pred_fallthru
        _
      // Predicated region
      $region17: #{_lambda_.1} parent=11 // pred_check
        %p163 = pneg %p117
      $region18: #{_lambda_.1} parent=11 // pred_check_branch
        %165 = sbr.rel (%p163) target = $region20
      $region19: #{_lambda_.1} parent=11 // pred_region
        _
      $region20: #{_lambda_.1} parent=11 // pred_fallthru
        _
    $region12: #{_lambda_.1} parent=5 // pred_fallthru
      _
    %p166 = scmp.lt.s32.totalorder %s11, 2
    // Predicated region
    $region21: #{_lambda_.1} parent=5 // pred_check
      %p167 = pneg %p166
    $region22: #{_lambda_.1} parent=5 // pred_check_branch
      %169 = sbr.rel (%p167) target = $region24
    $region23: #{_lambda_.1} parent=5 // pred_region
      // Predicated region
      $region25: #{_lambda_.1} parent=23 // pred_check
        %p170 = pneg %p43
      $region26: #{_lambda_.1} parent=23 // pred_check_branch
        %172 = sbr.rel (%p170) target = $region28
      $region27: #{_lambda_.1} parent=23 // pred_region
        %p173 = scmp.lt.s32.totalorder %s18, 1
        %s174 = scalar_select %p173, %s18, 1
        %s175 = smul.addr %s174, 2
        %s176 = smul.addr %s175, 8
        %s177 = scalar_lea.vmem %s0, %s176
      $region28: #{_lambda_.1} parent=23 // pred_fallthru
        _
      // Predicated region
      $region29: #{_lambda_.1} parent=23 // pred_check
        %p178 = pneg %p69
      $region30: #{_lambda_.1} parent=23 // pred_check_branch
        %180 = sbr.rel (%p178) target = $region32
      $region31: #{_lambda_.1} parent=23 // pred_region
        %p181 = scmp.lt.s32.totalorder %s18, 1
        %s182 = scalar_select %p181, %s18, 1
        %s183 = smul.addr %s182, 6
        %s184 = smul.addr %s183, 8
        %s185 = scalar_lea.vmem %s1, %s184
      $region32: #{_lambda_.1} parent=23 // pred_fallthru
        _
    $region24: #{_lambda_.1} parent=5 // pred_fallthru
      _
    %p186 = scmp.le.s32.totalorder 1, %s11
    %p187 = scmp.lt.s32.totalorder %s11, 3
    %p188 = pnand %p186, %p187
    %p189 = pneg %p188
    // Predicated region
    $region33: #{_lambda_.1} parent=5 // pred_check
      _
    $region34: #{_lambda_.1} parent=5 // pred_check_branch
      %191 = sbr.rel (%p188) target = $region36
    $region35: #{_lambda_.1} parent=5 // pred_region
      %s192 = ssub.s32 %s11, 1
      %p193 = scmp.lt.s32.totalorder %s20, 1
      %s194 = scalar_select %p193, %s20, 1
      %s195 = smul.addr %s194, 2
      %s196 = smul.addr %s195, 8
      %s197 = scalar_lea.vmem %s0, %s196
      %p198 = pneg %p49
      %p199 = pneg %p46
      %p200 = scmp.lt.s32.totalorder %s20, 1
      %s201 = scalar_select %p200, %s20, 1
      %s202 = smul.addr %s201, 6
      %s203 = smul.addr %s202, 8
      %s204 = scalar_lea.vmem %s1, %s203
      %p205 = pneg %p75
      %p206 = pneg %p72
      %p207 = pneg %p96
      %p208 = pneg %p93
      %p209 = pneg %p117
      %p210 = pneg %p114
      %p211 = pneg %p145
      %p212 = pneg %p142
      %s213 = smul.u32 2, %s21
      %p214 = scmp.lt.s32.totalorder %s20, 1
      %s215 = scalar_select %p214, %s20, 1
      %p216 = scmp.lt.s32.totalorder %s213, 1
      %s217 = scalar_select %p216, %s213, 1
      %s218 = smul.addr %s215, 2
      %s219 = sadd.s32 %s217, %s218
      %s220 = smul.addr %s219, 8
      %s221 = scalar_lea.vmem %s4, %s220
      %p222 = scmp.lt.s32.totalorder %s20, 1
      %s223 = scalar_select %p222, %s20, 1
      %s224 = smul.addr %s223, 2
      %s225 = smul.addr %s224, 8
      %s226 = scalar_lea.vmem %s0, %s225
      %p227 = scmp.lt.s32.totalorder %s20, 1
      %s228 = scalar_select %p227, %s20, 1
      %s229 = smul.addr %s228, 6
      %s230 = smul.addr %s229, 8
      %s231 = scalar_lea.vmem %s1, %s230
      %s232 = smul.u32 2, %s21
      %p233 = scmp.lt.s32.totalorder %s20, 1
      %s234 = scalar_select %p233, %s20, 1
      %p235 = scmp.lt.s32.totalorder %s232, 1
      %s236 = scalar_select %p235, %s232, 1
      %s237 = smul.addr %s234, 2
      %s238 = sadd.s32 %s236, %s237
      %s239 = smul.addr %s238, 8
      %s240 = scalar_lea.vmem %s4, %s239
      %s241 = smul.u32 2, %s21
      %s242 = smul.u32 %s21, 16
      %v243 = vld [vmem:[%s231] sm:$0xff]
      %v244 = vld [vmem:[%s231 + $0x8] sm:$0xff]
      %v245 = vld [vmem:[%s231 + $0x10] sm:$0xff]
      %v246 = vld [vmem:[%s231 + $0x18] sm:$0xff]
      %v247 = vld [vmem:[%s231 + $0x20] sm:$0xff]
      %v248 = vld [vmem:[%s231 + $0x28] sm:$0xff]
      %v249 = vld [vmem:[%s2] sm:$0x1]
      %s250 = sld [smem:[#allocation2]]
      %s251 = scalar_lea.vmem %s226, %s242
      %v252 = vld [vmem:[%s251] sm:$0xff]
      %v253 = vld [vmem:[%s251 + $0x8] sm:$0xff]
      %v254 = vlaneseq
      %v255 = vand.u32 %v254, 127
      %vm256 = vcmp.ge.s32.totalorder %v252, 0
      %vm257 = vcmp.ge.s32.totalorder %v253, 0
      %v258 = vsel %vm256, 1, 0
      %v259 = vsel %vm257, 1, 0
      %v260 = vcvt.s32.f32 %v258
      %v261 = vcvt.s32.f32 %v259
      %262 = vset.pattern.permute.xlu0 0
      %263 = vperm.xlu0 %262, %v252
      %v264 = vpop.permute.xlu0 %263
      %265 = vset.pattern.permute.xlu0 0
      %266 = vperm.xlu0 %265, %v253
      %v267 = vpop.permute.xlu0 %266
      %vm268 = vcmp.eq.s32.totalorder %v264, %v255
      %vm269 = vcmp.eq.s32.totalorder %v267, %v255
      %v270 = vsel %vm268, 1, 0
      %v271 = vsel %vm269, 1, 0
      %v272 = vcvt.s32.f32 %v270
      %v273 = vcvt.s32.f32 %v271
      %vm274 = vcmask 392192
      %v276 = vsel %vm274, %v272, 0
      %v279 = vsel %vm274, %v273, 0
      %281 = vmatpush.msra.mxu0 0.0
      %282 = vmatpush.msra.mxu0 0.0
      %283 = vmatpush.msra.mxu0 0.0
      %284 = vmatpush.msra.mxu0 0.0
      %285 = vmatpush.msra.mxu0 0.0
      %286 = vmatpush.msra.mxu0 0.0
      %287 = vmatpush.msra.mxu0 0.0
      %288 = vmatpush.msra.mxu0 0.0
      %289 = vmatpush.msra.mxu0 0.0
      %290 = vmatpush.msra.mxu0 0.0
      %v291 = vand.u32 %v248, 4294901760
      %292 = vmatpush.msra.mxu0 %v291
      %v293 = vand.u32 %v247, 4294901760
      %294 = vmatpush.msra.mxu0 %v293
      %v295 = vand.u32 %v246, 4294901760
      %296 = vmatpush.msra.mxu0 %v295
      %v297 = vand.u32 %v245, 4294901760
      %298 = vmatpush.msra.mxu0 %v297
      %v299 = vand.u32 %v244, 4294901760
      %300 = vmatpush.msra.mxu0 %v299
      %v301 = vand.u32 %v243, 4294901760
      %302 = vmatpush.msra.mxu0 %v301
      %v303 = vand.u32 %v276, 4294901760
      %v304 = vsub.f32 %v276, %v303
      %v305 = vand.u32 %v304, 4294901760
      %v306 = vsub.f32 %v304, %v305
      %v307 = vand.u32 %v306, 4294901760
      %308 = vmatmul.f32.gmra.mxu0 %v307
      %v309 = vpop.f32.mrf.mxu0
      %v310 = vadd.f32 0.0, %v309
      %v311 = vand.u32 %v279, 4294901760
      %v312 = vsub.f32 %v279, %v311
      %v313 = vand.u32 %v312, 4294901760
      %v314 = vsub.f32 %v312, %v313
      %v315 = vand.u32 %v314, 4294901760
      %316 = vmatmul.f32.gmra.mxu0 %v315
      %v317 = vpop.f32.mrf.mxu0
      %v318 = vadd.f32 0.0, %v317
      %319 = vdwg.mxu0
      %320 = vmatpush.msra.mxu0 0.0
      %321 = vmatpush.msra.mxu0 0.0
      %322 = vmatpush.msra.mxu0 0.0
      %323 = vmatpush.msra.mxu0 0.0
      %324 = vmatpush.msra.mxu0 0.0
      %325 = vmatpush.msra.mxu0 0.0
      %326 = vmatpush.msra.mxu0 0.0
      %327 = vmatpush.msra.mxu0 0.0
      %328 = vmatpush.msra.mxu0 0.0
      %329 = vmatpush.msra.mxu0 0.0
      %v330 = vand.u32 %v248, 4294901760
      %v331 = vsub.f32 %v248, %v330
      %v332 = vand.u32 %v331, 4294901760
      %v333 = vsub.f32 %v331, %v332
      %v334 = vand.u32 %v333, 4294901760
      %335 = vmatpush.msra.mxu0 %v334
      %v336 = vand.u32 %v247, 4294901760
      %v337 = vsub.f32 %v247, %v336
      %v338 = vand.u32 %v337, 4294901760
      %v339 = vsub.f32 %v337, %v338
      %v340 = vand.u32 %v339, 4294901760
      %341 = vmatpush.msra.mxu0 %v340
      %v342 = vand.u32 %v246, 4294901760
      %v343 = vsub.f32 %v246, %v342
      %v344 = vand.u32 %v343, 4294901760
      %v345 = vsub.f32 %v343, %v344
      %v346 = vand.u32 %v345, 4294901760
      %347 = vmatpush.msra.mxu0 %v346
      %v348 = vand.u32 %v245, 4294901760
      %v349 = vsub.f32 %v245, %v348
      %v350 = vand.u32 %v349, 4294901760
      %v351 = vsub.f32 %v349, %v350
      %v352 = vand.u32 %v351, 4294901760
      %353 = vmatpush.msra.mxu0 %v352
      %v354 = vand.u32 %v244, 4294901760
      %v355 = vsub.f32 %v244, %v354
      %v356 = vand.u32 %v355, 4294901760
      %v357 = vsub.f32 %v355, %v356
      %v358 = vand.u32 %v357, 4294901760
      %359 = vmatpush.msra.mxu0 %v358
      %v360 = vand.u32 %v243, 4294901760
      %v361 = vsub.f32 %v243, %v360
      %v362 = vand.u32 %v361, 4294901760
      %v363 = vsub.f32 %v361, %v362
      %v364 = vand.u32 %v363, 4294901760
      %365 = vmatpush.msra.mxu0 %v364
      %v366 = vand.u32 %v276, 4294901760
      %367 = vmatmul.f32.gmra.mxu0 %v366
      %v368 = vpop.f32.mrf.mxu0
      %v369 = vadd.f32 %v310, %v368
      %v370 = vand.u32 %v279, 4294901760
      %371 = vmatmul.f32.gmra.mxu0 %v370
      %v372 = vpop.f32.mrf.mxu0
      %v373 = vadd.f32 %v318, %v372
      %374 = vdwg.mxu0
      %375 = vmatpush.msra.mxu0 0.0
      %376 = vmatpush.msra.mxu0 0.0
      %377 = vmatpush.msra.mxu0 0.0
      %378 = vmatpush.msra.mxu0 0.0
      %379 = vmatpush.msra.mxu0 0.0
      %380 = vmatpush.msra.mxu0 0.0
      %381 = vmatpush.msra.mxu0 0.0
      %382 = vmatpush.msra.mxu0 0.0
      %383 = vmatpush.msra.mxu0 0.0
      %384 = vmatpush.msra.mxu0 0.0
      %v385 = vand.u32 %v248, 4294901760
      %v386 = vsub.f32 %v248, %v385
      %387 = vmatpush.msra.mxu0 %v386
      %v388 = vand.u32 %v247, 4294901760
      %v389 = vsub.f32 %v247, %v388
      %390 = vmatpush.msra.mxu0 %v389
      %v391 = vand.u32 %v246, 4294901760
      %v392 = vsub.f32 %v246, %v391
      %393 = vmatpush.msra.mxu0 %v392
      %v394 = vand.u32 %v245, 4294901760
      %v395 = vsub.f32 %v245, %v394
      %396 = vmatpush.msra.mxu0 %v395
      %v397 = vand.u32 %v244, 4294901760
      %v398 = vsub.f32 %v244, %v397
      %399 = vmatpush.msra.mxu0 %v398
      %v400 = vand.u32 %v243, 4294901760
      %v401 = vsub.f32 %v243, %v400
      %402 = vmatpush.msra.mxu0 %v401
      %v403 = vand.u32 %v276, 4294901760
      %v404 = vsub.f32 %v276, %v403
      %405 = vmatmul.f32.gmra.mxu0 %v404
      %v406 = vpop.f32.mrf.mxu0
      %v407 = vadd.f32 %v369, %v406
      %v408 = vand.u32 %v279, 4294901760
      %v409 = vsub.f32 %v279, %v408
      %410 = vmatmul.f32.gmra.mxu0 %v409
      %v411 = vpop.f32.mrf.mxu0
      %v412 = vadd.f32 %v373, %v411
      %413 = vdwg.mxu0
      %414 = vmatpush.msra.mxu0 0.0
      %415 = vmatpush.msra.mxu0 0.0
      %416 = vmatpush.msra.mxu0 0.0
      %417 = vmatpush.msra.mxu0 0.0
      %418 = vmatpush.msra.mxu0 0.0
      %419 = vmatpush.msra.mxu0 0.0
      %420 = vmatpush.msra.mxu0 0.0
      %421 = vmatpush.msra.mxu0 0.0
      %422 = vmatpush.msra.mxu0 0.0
      %423 = vmatpush.msra.mxu0 0.0
      %v424 = vand.u32 %v248, 4294901760
      %425 = vmatpush.msra.mxu0 %v424
      %v426 = vand.u32 %v247, 4294901760
      %427 = vmatpush.msra.mxu0 %v426
      %v428 = vand.u32 %v246, 4294901760
      %429 = vmatpush.msra.mxu0 %v428
      %v430 = vand.u32 %v245, 4294901760
      %431 = vmatpush.msra.mxu0 %v430
      %v432 = vand.u32 %v244, 4294901760
      %433 = vmatpush.msra.mxu0 %v432
      %v434 = vand.u32 %v243, 4294901760
      %435 = vmatpush.msra.mxu0 %v434
      %v436 = vand.u32 %v276, 4294901760
      %v437 = vsub.f32 %v276, %v436
      %v438 = vand.u32 %v437, 4294901760
      %439 = vmatmul.f32.gmra.mxu0 %v438
      %v440 = vpop.f32.mrf.mxu0
      %v441 = vadd.f32 %v407, %v440
      %v442 = vand.u32 %v279, 4294901760
      %v443 = vsub.f32 %v279, %v442
      %v444 = vand.u32 %v443, 4294901760
      %445 = vmatmul.f32.gmra.mxu0 %v444
      %v446 = vpop.f32.mrf.mxu0
      %v447 = vadd.f32 %v412, %v446
      %448 = vdwg.mxu0
      %449 = vmatpush.msra.mxu0 0.0
      %450 = vmatpush.msra.mxu0 0.0
      %451 = vmatpush.msra.mxu0 0.0
      %452 = vmatpush.msra.mxu0 0.0
      %453 = vmatpush.msra.mxu0 0.0
      %454 = vmatpush.msra.mxu0 0.0
      %455 = vmatpush.msra.mxu0 0.0
      %456 = vmatpush.msra.mxu0 0.0
      %457 = vmatpush.msra.mxu0 0.0
      %458 = vmatpush.msra.mxu0 0.0
      %v459 = vand.u32 %v248, 4294901760
      %v460 = vsub.f32 %v248, %v459
      %v461 = vand.u32 %v460, 4294901760
      %462 = vmatpush.msra.mxu0 %v461
      %v463 = vand.u32 %v247, 4294901760
      %v464 = vsub.f32 %v247, %v463
      %v465 = vand.u32 %v464, 4294901760
      %466 = vmatpush.msra.mxu0 %v465
      %v467 = vand.u32 %v246, 4294901760
      %v468 = vsub.f32 %v246, %v467
      %v469 = vand.u32 %v468, 4294901760
      %470 = vmatpush.msra.mxu0 %v469
      %v471 = vand.u32 %v245, 4294901760
      %v472 = vsub.f32 %v245, %v471
      %v473 = vand.u32 %v472, 4294901760
      %474 = vmatpush.msra.mxu0 %v473
      %v475 = vand.u32 %v244, 4294901760
      %v476 = vsub.f32 %v244, %v475
      %v477 = vand.u32 %v476, 4294901760
      %478 = vmatpush.msra.mxu0 %v477
      %v479 = vand.u32 %v243, 4294901760
      %v480 = vsub.f32 %v243, %v479
      %v481 = vand.u32 %v480, 4294901760
      %482 = vmatpush.msra.mxu0 %v481
      %v483 = vand.u32 %v276, 4294901760
      %484 = vmatmul.f32.gmra.mxu0 %v483
      %v485 = vpop.f32.mrf.mxu0
      %v486 = vadd.f32 %v441, %v485
      %v487 = vand.u32 %v279, 4294901760
      %488 = vmatmul.f32.gmra.mxu0 %v487
      %v489 = vpop.f32.mrf.mxu0
      %v490 = vadd.f32 %v447, %v489
      %491 = vdwg.mxu0
      %492 = vmatpush.msra.mxu0 0.0
      %493 = vmatpush.msra.mxu0 0.0
      %494 = vmatpush.msra.mxu0 0.0
      %495 = vmatpush.msra.mxu0 0.0
      %496 = vmatpush.msra.mxu0 0.0
      %497 = vmatpush.msra.mxu0 0.0
      %498 = vmatpush.msra.mxu0 0.0
      %499 = vmatpush.msra.mxu0 0.0
      %500 = vmatpush.msra.mxu0 0.0
      %501 = vmatpush.msra.mxu0 0.0
      %v502 = vand.u32 %v248, 4294901760
      %503 = vmatpush.msra.mxu0 %v502
      %v504 = vand.u32 %v247, 4294901760
      %505 = vmatpush.msra.mxu0 %v504
      %v506 = vand.u32 %v246, 4294901760
      %507 = vmatpush.msra.mxu0 %v506
      %v508 = vand.u32 %v245, 4294901760
      %509 = vmatpush.msra.mxu0 %v508
      %v510 = vand.u32 %v244, 4294901760
      %511 = vmatpush.msra.mxu0 %v510
      %v512 = vand.u32 %v243, 4294901760
      %513 = vmatpush.msra.mxu0 %v512
      %v514 = vand.u32 %v276, 4294901760
      %515 = vmatmul.f32.gmra.mxu0 %v514
      %v516 = vpop.f32.mrf.mxu0
      %v517 = vadd.f32 %v486, %v516
      %v518 = vand.u32 %v279, 4294901760
      %519 = vmatmul.f32.gmra.mxu0 %v518
      %v520 = vpop.f32.mrf.mxu0
      %v521 = vadd.f32 %v490, %v520
      %522 = vdwg.mxu0
      %v524 = vperm.slane %v249, 0
      %v526 = vmul.f32 %v517, %v524
      %v527 = vmul.f32 %v521, %v524
      %528 = vadd.xlane.f32.xlu0 %v526
      %v529 = vpop.xlane.xlu0 %528
      %530 = vadd.xlane.f32.xlu0 %v527
      %v531 = vpop.xlane.xlu0 %530
      %v532 = vstv %s250
      %v533 = vadd.f32 %v529, %v532
      %v534 = vadd.f32 %v531, %v532
      %v535 = vmul.f32 %v533, %v260
      %v536 = vmul.f32 %v534, %v261
      %537 = vset.pattern.permute.xlu0 1
      %538 = vperm.xlu0 %537, %v252
      %v539 = vpop.permute.xlu0 %538
      %540 = vset.pattern.permute.xlu0 1
      %541 = vperm.xlu0 %540, %v253
      %v542 = vpop.permute.xlu0 %541
      %vm543 = vcmp.eq.s32.totalorder %v539, %v255
      %vm544 = vcmp.eq.s32.totalorder %v542, %v255
      %v545 = vsel %vm543, 1, 0
      %v546 = vsel %vm544, 1, 0
      %v547 = vcvt.s32.f32 %v545
      %v548 = vcvt.s32.f32 %v546
      %v550 = vsel %vm274, %v547, 0
      %v553 = vsel %vm274, %v548, 0
      %555 = vmatpush.msra.mxu0 0.0
      %556 = vmatpush.msra.mxu0 0.0
      %557 = vmatpush.msra.mxu0 0.0
      %558 = vmatpush.msra.mxu0 0.0
      %559 = vmatpush.msra.mxu0 0.0
      %560 = vmatpush.msra.mxu0 0.0
      %561 = vmatpush.msra.mxu0 0.0
      %562 = vmatpush.msra.mxu0 0.0
      %563 = vmatpush.msra.mxu0 0.0
      %564 = vmatpush.msra.mxu0 0.0
      %v565 = vand.u32 %v248, 4294901760
      %566 = vmatpush.msra.mxu0 %v565
      %v567 = vand.u32 %v247, 4294901760
      %568 = vmatpush.msra.mxu0 %v567
      %v569 = vand.u32 %v246, 4294901760
      %570 = vmatpush.msra.mxu0 %v569
      %v571 = vand.u32 %v245, 4294901760
      %572 = vmatpush.msra.mxu0 %v571
      %v573 = vand.u32 %v244, 4294901760
      %574 = vmatpush.msra.mxu0 %v573
      %v575 = vand.u32 %v243, 4294901760
      %576 = vmatpush.msra.mxu0 %v575
      %v577 = vand.u32 %v550, 4294901760
      %v578 = vsub.f32 %v550, %v577
      %v579 = vand.u32 %v578, 4294901760
      %v580 = vsub.f32 %v578, %v579
      %v581 = vand.u32 %v580, 4294901760
      %582 = vmatmul.f32.gmra.mxu0 %v581
      %v583 = vpop.f32.mrf.mxu0
      %v584 = vadd.f32 0.0, %v583
      %v585 = vand.u32 %v553, 4294901760
      %v586 = vsub.f32 %v553, %v585
      %v587 = vand.u32 %v586, 4294901760
      %v588 = vsub.f32 %v586, %v587
      %v589 = vand.u32 %v588, 4294901760
      %590 = vmatmul.f32.gmra.mxu0 %v589
      %v591 = vpop.f32.mrf.mxu0
      %v592 = vadd.f32 0.0, %v591
      %593 = vdwg.mxu0
      %594 = vmatpush.msra.mxu0 0.0
      %595 = vmatpush.msra.mxu0 0.0
      %596 = vmatpush.msra.mxu0 0.0
      %597 = vmatpush.msra.mxu0 0.0
      %598 = vmatpush.msra.mxu0 0.0
      %599 = vmatpush.msra.mxu0 0.0
      %600 = vmatpush.msra.mxu0 0.0
      %601 = vmatpush.msra.mxu0 0.0
      %602 = vmatpush.msra.mxu0 0.0
      %603 = vmatpush.msra.mxu0 0.0
      %v604 = vand.u32 %v248, 4294901760
      %v605 = vsub.f32 %v248, %v604
      %v606 = vand.u32 %v605, 4294901760
      %v607 = vsub.f32 %v605, %v606
      %v608 = vand.u32 %v607, 4294901760
      %609 = vmatpush.msra.mxu0 %v608
      %v610 = vand.u32 %v247, 4294901760
      %v611 = vsub.f32 %v247, %v610
      %v612 = vand.u32 %v611, 4294901760
      %v613 = vsub.f32 %v611, %v612
      %v614 = vand.u32 %v613, 4294901760
      %615 = vmatpush.msra.mxu0 %v614
      %v616 = vand.u32 %v246, 4294901760
      %v617 = vsub.f32 %v246, %v616
      %v618 = vand.u32 %v617, 4294901760
      %v619 = vsub.f32 %v617, %v618
      %v620 = vand.u32 %v619, 4294901760
      %621 = vmatpush.msra.mxu0 %v620
      %v622 = vand.u32 %v245, 4294901760
      %v623 = vsub.f32 %v245, %v622
      %v624 = vand.u32 %v623, 4294901760
      %v625 = vsub.f32 %v623, %v624
      %v626 = vand.u32 %v625, 4294901760
      %627 = vmatpush.msra.mxu0 %v626
      %v628 = vand.u32 %v244, 4294901760
      %v629 = vsub.f32 %v244, %v628
      %v630 = vand.u32 %v629, 4294901760
      %v631 = vsub.f32 %v629, %v630
      %v632 = vand.u32 %v631, 4294901760
      %633 = vmatpush.msra.mxu0 %v632
      %v634 = vand.u32 %v243, 4294901760
      %v635 = vsub.f32 %v243, %v634
      %v636 = vand.u32 %v635, 4294901760
      %v637 = vsub.f32 %v635, %v636
      %v638 = vand.u32 %v637, 4294901760
      %639 = vmatpush.msra.mxu0 %v638
      %v640 = vand.u32 %v550, 4294901760
      %641 = vmatmul.f32.gmra.mxu0 %v640
      %v642 = vpop.f32.mrf.mxu0
      %v643 = vadd.f32 %v584, %v642
      %v644 = vand.u32 %v553, 4294901760
      %645 = vmatmul.f32.gmra.mxu0 %v644
      %v646 = vpop.f32.mrf.mxu0
      %v647 = vadd.f32 %v592, %v646
      %648 = vdwg.mxu0
      %649 = vmatpush.msra.mxu0 0.0
      %650 = vmatpush.msra.mxu0 0.0
      %651 = vmatpush.msra.mxu0 0.0
      %652 = vmatpush.msra.mxu0 0.0
      %653 = vmatpush.msra.mxu0 0.0
      %654 = vmatpush.msra.mxu0 0.0
      %655 = vmatpush.msra.mxu0 0.0
      %656 = vmatpush.msra.mxu0 0.0
      %657 = vmatpush.msra.mxu0 0.0
      %658 = vmatpush.msra.mxu0 0.0
      %v659 = vand.u32 %v248, 4294901760
      %v660 = vsub.f32 %v248, %v659
      %661 = vmatpush.msra.mxu0 %v660
      %v662 = vand.u32 %v247, 4294901760
      %v663 = vsub.f32 %v247, %v662
      %664 = vmatpush.msra.mxu0 %v663
      %v665 = vand.u32 %v246, 4294901760
      %v666 = vsub.f32 %v246, %v665
      %667 = vmatpush.msra.mxu0 %v666
      %v668 = vand.u32 %v245, 4294901760
      %v669 = vsub.f32 %v245, %v668
      %670 = vmatpush.msra.mxu0 %v669
      %v671 = vand.u32 %v244, 4294901760
      %v672 = vsub.f32 %v244, %v671
      %673 = vmatpush.msra.mxu0 %v672
      %v674 = vand.u32 %v243, 4294901760
      %v675 = vsub.f32 %v243, %v674
      %676 = vmatpush.msra.mxu0 %v675
      %v677 = vand.u32 %v550, 4294901760
      %v678 = vsub.f32 %v550, %v677
      %679 = vmatmul.f32.gmra.mxu0 %v678
      %v680 = vpop.f32.mrf.mxu0
      %v681 = vadd.f32 %v643, %v680
      %v682 = vand.u32 %v553, 4294901760
      %v683 = vsub.f32 %v553, %v682
      %684 = vmatmul.f32.gmra.mxu0 %v683
      %v685 = vpop.f32.mrf.mxu0
      %v686 = vadd.f32 %v647, %v685
      %687 = vdwg.mxu0
      %688 = vmatpush.msra.mxu0 0.0
      %689 = vmatpush.msra.mxu0 0.0
      %690 = vmatpush.msra.mxu0 0.0
      %691 = vmatpush.msra.mxu0 0.0
      %692 = vmatpush.msra.mxu0 0.0
      %693 = vmatpush.msra.mxu0 0.0
      %694 = vmatpush.msra.mxu0 0.0
      %695 = vmatpush.msra.mxu0 0.0
      %696 = vmatpush.msra.mxu0 0.0
      %697 = vmatpush.msra.mxu0 0.0
      %v698 = vand.u32 %v248, 4294901760
      %699 = vmatpush.msra.mxu0 %v698
      %v700 = vand.u32 %v247, 4294901760
      %701 = vmatpush.msra.mxu0 %v700
      %v702 = vand.u32 %v246, 4294901760
      %703 = vmatpush.msra.mxu0 %v702
      %v704 = vand.u32 %v245, 4294901760
      %705 = vmatpush.msra.mxu0 %v704
      %v706 = vand.u32 %v244, 4294901760
      %707 = vmatpush.msra.mxu0 %v706
      %v708 = vand.u32 %v243, 4294901760
      %709 = vmatpush.msra.mxu0 %v708
      %v710 = vand.u32 %v550, 4294901760
      %v711 = vsub.f32 %v550, %v710
      %v712 = vand.u32 %v711, 4294901760
      %713 = vmatmul.f32.gmra.mxu0 %v712
      %v714 = vpop.f32.mrf.mxu0
      %v715 = vadd.f32 %v681, %v714
      %v716 = vand.u32 %v553, 4294901760
      %v717 = vsub.f32 %v553, %v716
      %v718 = vand.u32 %v717, 4294901760
      %719 = vmatmul.f32.gmra.mxu0 %v718
      %v720 = vpop.f32.mrf.mxu0
      %v721 = vadd.f32 %v686, %v720
      %722 = vdwg.mxu0
      %723 = vmatpush.msra.mxu0 0.0
      %724 = vmatpush.msra.mxu0 0.0
      %725 = vmatpush.msra.mxu0 0.0
      %726 = vmatpush.msra.mxu0 0.0
      %727 = vmatpush.msra.mxu0 0.0
      %728 = vmatpush.msra.mxu0 0.0
      %729 = vmatpush.msra.mxu0 0.0
      %730 = vmatpush.msra.mxu0 0.0
      %731 = vmatpush.msra.mxu0 0.0
      %732 = vmatpush.msra.mxu0 0.0
      %v733 = vand.u32 %v248, 4294901760
      %v734 = vsub.f32 %v248, %v733
      %v735 = vand.u32 %v734, 4294901760
      %736 = vmatpush.msra.mxu0 %v735
      %v737 = vand.u32 %v247, 4294901760
      %v738 = vsub.f32 %v247, %v737
      %v739 = vand.u32 %v738, 4294901760
      %740 = vmatpush.msra.mxu0 %v739
      %v741 = vand.u32 %v246, 4294901760
      %v742 = vsub.f32 %v246, %v741
      %v743 = vand.u32 %v742, 4294901760
      %744 = vmatpush.msra.mxu0 %v743
      %v745 = vand.u32 %v245, 4294901760
      %v746 = vsub.f32 %v245, %v745
      %v747 = vand.u32 %v746, 4294901760
      %748 = vmatpush.msra.mxu0 %v747
      %v749 = vand.u32 %v244, 4294901760
      %v750 = vsub.f32 %v244, %v749
      %v751 = vand.u32 %v750, 4294901760
      %752 = vmatpush.msra.mxu0 %v751
      %v753 = vand.u32 %v243, 4294901760
      %v754 = vsub.f32 %v243, %v753
      %v755 = vand.u32 %v754, 4294901760
      %756 = vmatpush.msra.mxu0 %v755
      %v757 = vand.u32 %v550, 4294901760
      %758 = vmatmul.f32.gmra.mxu0 %v757
      %v759 = vpop.f32.mrf.mxu0
      %v760 = vadd.f32 %v715, %v759
      %v761 = vand.u32 %v553, 4294901760
      %762 = vmatmul.f32.gmra.mxu0 %v761
      %v763 = vpop.f32.mrf.mxu0
      %v764 = vadd.f32 %v721, %v763
      %765 = vdwg.mxu0
      %766 = vmatpush.msra.mxu0 0.0
      %767 = vmatpush.msra.mxu0 0.0
      %768 = vmatpush.msra.mxu0 0.0
      %769 = vmatpush.msra.mxu0 0.0
      %770 = vmatpush.msra.mxu0 0.0
      %771 = vmatpush.msra.mxu0 0.0
      %772 = vmatpush.msra.mxu0 0.0
      %773 = vmatpush.msra.mxu0 0.0
      %774 = vmatpush.msra.mxu0 0.0
      %775 = vmatpush.msra.mxu0 0.0
      %v776 = vand.u32 %v248, 4294901760
      %777 = vmatpush.msra.mxu0 %v776
      %v778 = vand.u32 %v247, 4294901760
      %779 = vmatpush.msra.mxu0 %v778
      %v780 = vand.u32 %v246, 4294901760
      %781 = vmatpush.msra.mxu0 %v780
      %v782 = vand.u32 %v245, 4294901760
      %783 = vmatpush.msra.mxu0 %v782
      %v784 = vand.u32 %v244, 4294901760
      %785 = vmatpush.msra.mxu0 %v784
      %v786 = vand.u32 %v243, 4294901760
      %787 = vmatpush.msra.mxu0 %v786
      %v788 = vand.u32 %v550, 4294901760
      %789 = vmatmul.f32.gmra.mxu0 %v788
      %v790 = vpop.f32.mrf.mxu0
      %v791 = vadd.f32 %v760, %v790
      %v792 = vand.u32 %v553, 4294901760
      %793 = vmatmul.f32.gmra.mxu0 %v792
      %v794 = vpop.f32.mrf.mxu0
      %v795 = vadd.f32 %v764, %v794
      %796 = vdwg.mxu0
      %v797 = vmul.f32 %v791, %v524
      %v798 = vmul.f32 %v795, %v524
      %799 = vadd.xlane.f32.xlu0 %v797
      %v800 = vpop.xlane.xlu0 %799
      %801 = vadd.xlane.f32.xlu0 %v798
      %v802 = vpop.xlane.xlu0 %801
      %v803 = vadd.f32 %v800, %v532
      %v804 = vadd.f32 %v802, %v532
      %v805 = vmul.f32 %v803, %v260
      %v806 = vmul.f32 %v804, %v261
      %807 = vset.pattern.permute.xlu0 2
      %808 = vperm.xlu0 %807, %v252
      %v809 = vpop.permute.xlu0 %808
      %810 = vset.pattern.permute.xlu0 2
      %811 = vperm.xlu0 %810, %v253
      %v812 = vpop.permute.xlu0 %811
      %vm813 = vcmp.eq.s32.totalorder %v809, %v255
      %vm814 = vcmp.eq.s32.totalorder %v812, %v255
      %v815 = vsel %vm813, 1, 0
      %v816 = vsel %vm814, 1, 0
      %v817 = vcvt.s32.f32 %v815
      %v818 = vcvt.s32.f32 %v816
      %v820 = vsel %vm274, %v817, 0
      %v823 = vsel %vm274, %v818, 0
      %825 = vmatpush.msra.mxu0 0.0
      %826 = vmatpush.msra.mxu0 0.0
      %827 = vmatpush.msra.mxu0 0.0
      %828 = vmatpush.msra.mxu0 0.0
      %829 = vmatpush.msra.mxu0 0.0
      %830 = vmatpush.msra.mxu0 0.0
      %831 = vmatpush.msra.mxu0 0.0
      %832 = vmatpush.msra.mxu0 0.0
      %833 = vmatpush.msra.mxu0 0.0
      %834 = vmatpush.msra.mxu0 0.0
      %v835 = vand.u32 %v248, 4294901760
      %836 = vmatpush.msra.mxu0 %v835
      %v837 = vand.u32 %v247, 4294901760
      %838 = vmatpush.msra.mxu0 %v837
      %v839 = vand.u32 %v246, 4294901760
      %840 = vmatpush.msra.mxu0 %v839
      %v841 = vand.u32 %v245, 4294901760
      %842 = vmatpush.msra.mxu0 %v841
      %v843 = vand.u32 %v244, 4294901760
      %844 = vmatpush.msra.mxu0 %v843
      %v845 = vand.u32 %v243, 4294901760
      %846 = vmatpush.msra.mxu0 %v845
      %v847 = vand.u32 %v820, 4294901760
      %v848 = vsub.f32 %v820, %v847
      %v849 = vand.u32 %v848, 4294901760
      %v850 = vsub.f32 %v848, %v849
      %v851 = vand.u32 %v850, 4294901760
      %852 = vmatmul.f32.gmra.mxu0 %v851
      %v853 = vpop.f32.mrf.mxu0
      %v854 = vadd.f32 0.0, %v853
      %v855 = vand.u32 %v823, 4294901760
      %v856 = vsub.f32 %v823, %v855
      %v857 = vand.u32 %v856, 4294901760
      %v858 = vsub.f32 %v856, %v857
      %v859 = vand.u32 %v858, 4294901760
      %860 = vmatmul.f32.gmra.mxu0 %v859
      %v861 = vpop.f32.mrf.mxu0
      %v862 = vadd.f32 0.0, %v861
      %863 = vdwg.mxu0
      %864 = vmatpush.msra.mxu0 0.0
      %865 = vmatpush.msra.mxu0 0.0
      %866 = vmatpush.msra.mxu0 0.0
      %867 = vmatpush.msra.mxu0 0.0
      %868 = vmatpush.msra.mxu0 0.0
      %869 = vmatpush.msra.mxu0 0.0
      %870 = vmatpush.msra.mxu0 0.0
      %871 = vmatpush.msra.mxu0 0.0
      %872 = vmatpush.msra.mxu0 0.0
      %873 = vmatpush.msra.mxu0 0.0
      %v874 = vand.u32 %v248, 4294901760
      %v875 = vsub.f32 %v248, %v874
      %v876 = vand.u32 %v875, 4294901760
      %v877 = vsub.f32 %v875, %v876
      %v878 = vand.u32 %v877, 4294901760
      %879 = vmatpush.msra.mxu0 %v878
      %v880 = vand.u32 %v247, 4294901760
      %v881 = vsub.f32 %v247, %v880
      %v882 = vand.u32 %v881, 4294901760
      %v883 = vsub.f32 %v881, %v882
      %v884 = vand.u32 %v883, 4294901760
      %885 = vmatpush.msra.mxu0 %v884
      %v886 = vand.u32 %v246, 4294901760
      %v887 = vsub.f32 %v246, %v886
      %v888 = vand.u32 %v887, 4294901760
      %v889 = vsub.f32 %v887, %v888
      %v890 = vand.u32 %v889, 4294901760
      %891 = vmatpush.msra.mxu0 %v890
      %v892 = vand.u32 %v245, 4294901760
      %v893 = vsub.f32 %v245, %v892
      %v894 = vand.u32 %v893, 4294901760
      %v895 = vsub.f32 %v893, %v894
      %v896 = vand.u32 %v895, 4294901760
      %897 = vmatpush.msra.mxu0 %v896
      %v898 = vand.u32 %v244, 4294901760
      %v899 = vsub.f32 %v244, %v898
      %v900 = vand.u32 %v899, 4294901760
      %v901 = vsub.f32 %v899, %v900
      %v902 = vand.u32 %v901, 4294901760
      %903 = vmatpush.msra.mxu0 %v902
      %v904 = vand.u32 %v243, 4294901760
      %v905 = vsub.f32 %v243, %v904
      %v906 = vand.u32 %v905, 4294901760
      %v907 = vsub.f32 %v905, %v906
      %v908 = vand.u32 %v907, 4294901760
      %909 = vmatpush.msra.mxu0 %v908
      %v910 = vand.u32 %v820, 4294901760
      %911 = vmatmul.f32.gmra.mxu0 %v910
      %v912 = vpop.f32.mrf.mxu0
      %v913 = vadd.f32 %v854, %v912
      %v914 = vand.u32 %v823, 4294901760
      %915 = vmatmul.f32.gmra.mxu0 %v914
      %v916 = vpop.f32.mrf.mxu0
      %v917 = vadd.f32 %v862, %v916
      %918 = vdwg.mxu0
      %919 = vmatpush.msra.mxu0 0.0
      %920 = vmatpush.msra.mxu0 0.0
      %921 = vmatpush.msra.mxu0 0.0
      %922 = vmatpush.msra.mxu0 0.0
      %923 = vmatpush.msra.mxu0 0.0
      %924 = vmatpush.msra.mxu0 0.0
      %925 = vmatpush.msra.mxu0 0.0
      %926 = vmatpush.msra.mxu0 0.0
      %927 = vmatpush.msra.mxu0 0.0
      %928 = vmatpush.msra.mxu0 0.0
      %v929 = vand.u32 %v248, 4294901760
      %v930 = vsub.f32 %v248, %v929
      %931 = vmatpush.msra.mxu0 %v930
      %v932 = vand.u32 %v247, 4294901760
      %v933 = vsub.f32 %v247, %v932
      %934 = vmatpush.msra.mxu0 %v933
      %v935 = vand.u32 %v246, 4294901760
      %v936 = vsub.f32 %v246, %v935
      %937 = vmatpush.msra.mxu0 %v936
      %v938 = vand.u32 %v245, 4294901760
      %v939 = vsub.f32 %v245, %v938
      %940 = vmatpush.msra.mxu0 %v939
      %v941 = vand.u32 %v244, 4294901760
      %v942 = vsub.f32 %v244, %v941
      %943 = vmatpush.msra.mxu0 %v942
      %v944 = vand.u32 %v243, 4294901760
      %v945 = vsub.f32 %v243, %v944
      %946 = vmatpush.msra.mxu0 %v945
      %v947 = vand.u32 %v820, 4294901760
      %v948 = vsub.f32 %v820, %v947
      %949 = vmatmul.f32.gmra.mxu0 %v948
      %v950 = vpop.f32.mrf.mxu0
      %v951 = vadd.f32 %v913, %v950
      %v952 = vand.u32 %v823, 4294901760
      %v953 = vsub.f32 %v823, %v952
      %954 = vmatmul.f32.gmra.mxu0 %v953
      %v955 = vpop.f32.mrf.mxu0
      %v956 = vadd.f32 %v917, %v955
      %957 = vdwg.mxu0
      %958 = vmatpush.msra.mxu0 0.0
      %959 = vmatpush.msra.mxu0 0.0
      %960 = vmatpush.msra.mxu0 0.0
      %961 = vmatpush.msra.mxu0 0.0
      %962 = vmatpush.msra.mxu0 0.0
      %963 = vmatpush.msra.mxu0 0.0
      %964 = vmatpush.msra.mxu0 0.0
      %965 = vmatpush.msra.mxu0 0.0
      %966 = vmatpush.msra.mxu0 0.0
      %967 = vmatpush.msra.mxu0 0.0
      %v968 = vand.u32 %v248, 4294901760
      %969 = vmatpush.msra.mxu0 %v968
      %v970 = vand.u32 %v247, 4294901760
      %971 = vmatpush.msra.mxu0 %v970
      %v972 = vand.u32 %v246, 4294901760
      %973 = vmatpush.msra.mxu0 %v972
      %v974 = vand.u32 %v245, 4294901760
      %975 = vmatpush.msra.mxu0 %v974
      %v976 = vand.u32 %v244, 4294901760
      %977 = vmatpush.msra.mxu0 %v976
      %v978 = vand.u32 %v243, 4294901760
      %979 = vmatpush.msra.mxu0 %v978
      %v980 = vand.u32 %v820, 4294901760
      %v981 = vsub.f32 %v820, %v980
      %v982 = vand.u32 %v981, 4294901760
      %983 = vmatmul.f32.gmra.mxu0 %v982
      %v984 = vpop.f32.mrf.mxu0
      %v985 = vadd.f32 %v951, %v984
      %v986 = vand.u32 %v823, 4294901760
      %v987 = vsub.f32 %v823, %v986
      %v988 = vand.u32 %v987, 4294901760
      %989 = vmatmul.f32.gmra.mxu0 %v988
      %v990 = vpop.f32.mrf.mxu0
      %v991 = vadd.f32 %v956, %v990
      %992 = vdwg.mxu0
      %993 = vmatpush.msra.mxu0 0.0
      %994 = vmatpush.msra.mxu0 0.0
      %995 = vmatpush.msra.mxu0 0.0
      %996 = vmatpush.msra.mxu0 0.0
      %997 = vmatpush.msra.mxu0 0.0
      %998 = vmatpush.msra.mxu0 0.0
      %999 = vmatpush.msra.mxu0 0.0
      %1000 = vmatpush.msra.mxu0 0.0
      %1001 = vmatpush.msra.mxu0 0.0
      %1002 = vmatpush.msra.mxu0 0.0
      %v1003 = vand.u32 %v248, 4294901760
      %v1004 = vsub.f32 %v248, %v1003
      %v1005 = vand.u32 %v1004, 4294901760
      %1006 = vmatpush.msra.mxu0 %v1005
      %v1007 = vand.u32 %v247, 4294901760
      %v1008 = vsub.f32 %v247, %v1007
      %v1009 = vand.u32 %v1008, 4294901760
      %1010 = vmatpush.msra.mxu0 %v1009
      %v1011 = vand.u32 %v246, 4294901760
      %v1012 = vsub.f32 %v246, %v1011
      %v1013 = vand.u32 %v1012, 4294901760
      %1014 = vmatpush.msra.mxu0 %v1013
      %v1015 = vand.u32 %v245, 4294901760
      %v1016 = vsub.f32 %v245, %v1015
      %v1017 = vand.u32 %v1016, 4294901760
      %1018 = vmatpush.msra.mxu0 %v1017
      %v1019 = vand.u32 %v244, 4294901760
      %v1020 = vsub.f32 %v244, %v1019
      %v1021 = vand.u32 %v1020, 4294901760
      %1022 = vmatpush.msra.mxu0 %v1021
      %v1023 = vand.u32 %v243, 4294901760
      %v1024 = vsub.f32 %v243, %v1023
      %v1025 = vand.u32 %v1024, 4294901760
      %1026 = vmatpush.msra.mxu0 %v1025
      %v1027 = vand.u32 %v820, 4294901760
      %1028 = vmatmul.f32.gmra.mxu0 %v1027
      %v1029 = vpop.f32.mrf.mxu0
      %v1030 = vadd.f32 %v985, %v1029
      %v1031 = vand.u32 %v823, 4294901760
      %1032 = vmatmul.f32.gmra.mxu0 %v1031
      %v1033 = vpop.f32.mrf.mxu0
      %v1034 = vadd.f32 %v991, %v1033
      %1035 = vdwg.mxu0
      %1036 = vmatpush.msra.mxu0 0.0
      %1037 = vmatpush.msra.mxu0 0.0
      %1038 = vmatpush.msra.mxu0 0.0
      %1039 = vmatpush.msra.mxu0 0.0
      %1040 = vmatpush.msra.mxu0 0.0
      %1041 = vmatpush.msra.mxu0 0.0
      %1042 = vmatpush.msra.mxu0 0.0
      %1043 = vmatpush.msra.mxu0 0.0
      %1044 = vmatpush.msra.mxu0 0.0
      %1045 = vmatpush.msra.mxu0 0.0
      %v1046 = vand.u32 %v248, 4294901760
      %1047 = vmatpush.msra.mxu0 %v1046
      %v1048 = vand.u32 %v247, 4294901760
      %1049 = vmatpush.msra.mxu0 %v1048
      %v1050 = vand.u32 %v246, 4294901760
      %1051 = vmatpush.msra.mxu0 %v1050
      %v1052 = vand.u32 %v245, 4294901760
      %1053 = vmatpush.msra.mxu0 %v1052
      %v1054 = vand.u32 %v244, 4294901760
      %1055 = vmatpush.msra.mxu0 %v1054
      %v1056 = vand.u32 %v243, 4294901760
      %1057 = vmatpush.msra.mxu0 %v1056
      %v1058 = vand.u32 %v820, 4294901760
      %1059 = vmatmul.f32.gmra.mxu0 %v1058
      %v1060 = vpop.f32.mrf.mxu0
      %v1061 = vadd.f32 %v1030, %v1060
      %v1062 = vand.u32 %v823, 4294901760
      %1063 = vmatmul.f32.gmra.mxu0 %v1062
      %v1064 = vpop.f32.mrf.mxu0
      %v1065 = vadd.f32 %v1034, %v1064
      %1066 = vdwg.mxu0
      %v1067 = vmul.f32 %v1061, %v524
      %v1068 = vmul.f32 %v1065, %v524
      %1069 = vadd.xlane.f32.xlu0 %v1067
      %v1070 = vpop.xlane.xlu0 %1069
      %1071 = vadd.xlane.f32.xlu0 %v1068
      %v1072 = vpop.xlane.xlu0 %1071
      %v1073 = vadd.f32 %v1070, %v532
      %v1074 = vadd.f32 %v1072, %v532
      %v1075 = vmul.f32 %v1073, %v260
      %v1076 = vmul.f32 %v1074, %v261
      %1077 = vset.pattern.permute.xlu0 3
      %1078 = vperm.xlu0 %1077, %v252
      %v1079 = vpop.permute.xlu0 %1078
      %1080 = vset.pattern.permute.xlu0 3
      %1081 = vperm.xlu0 %1080, %v253
      %v1082 = vpop.permute.xlu0 %1081
      %vm1083 = vcmp.eq.s32.totalorder %v1079, %v255
      %vm1084 = vcmp.eq.s32.totalorder %v1082, %v255
      %v1085 = vsel %vm1083, 1, 0
      %v1086 = vsel %vm1084, 1, 0
      %v1087 = vcvt.s32.f32 %v1085
      %v1088 = vcvt.s32.f32 %v1086
      %v1090 = vsel %vm274, %v1087, 0
      %v1093 = vsel %vm274, %v1088, 0
      %1095 = vmatpush.msra.mxu0 0.0
      %1096 = vmatpush.msra.mxu0 0.0
      %1097 = vmatpush.msra.mxu0 0.0
      %1098 = vmatpush.msra.mxu0 0.0
      %1099 = vmatpush.msra.mxu0 0.0
      %1100 = vmatpush.msra.mxu0 0.0
      %1101 = vmatpush.msra.mxu0 0.0
      %1102 = vmatpush.msra.mxu0 0.0
      %1103 = vmatpush.msra.mxu0 0.0
      %1104 = vmatpush.msra.mxu0 0.0
      %v1105 = vand.u32 %v248, 4294901760
      %1106 = vmatpush.msra.mxu0 %v1105
      %v1107 = vand.u32 %v247, 4294901760
      %1108 = vmatpush.msra.mxu0 %v1107
      %v1109 = vand.u32 %v246, 4294901760
      %1110 = vmatpush.msra.mxu0 %v1109
      %v1111 = vand.u32 %v245, 4294901760
      %1112 = vmatpush.msra.mxu0 %v1111
      %v1113 = vand.u32 %v244, 4294901760
      %1114 = vmatpush.msra.mxu0 %v1113
      %v1115 = vand.u32 %v243, 4294901760
      %1116 = vmatpush.msra.mxu0 %v1115
      %v1117 = vand.u32 %v1090, 4294901760
      %v1118 = vsub.f32 %v1090, %v1117
      %v1119 = vand.u32 %v1118, 4294901760
      %v1120 = vsub.f32 %v1118, %v1119
      %v1121 = vand.u32 %v1120, 4294901760
      %1122 = vmatmul.f32.gmra.mxu0 %v1121
      %v1123 = vpop.f32.mrf.mxu0
      %v1124 = vadd.f32 0.0, %v1123
      %v1125 = vand.u32 %v1093, 4294901760
      %v1126 = vsub.f32 %v1093, %v1125
      %v1127 = vand.u32 %v1126, 4294901760
      %v1128 = vsub.f32 %v1126, %v1127
      %v1129 = vand.u32 %v1128, 4294901760
      %1130 = vmatmul.f32.gmra.mxu0 %v1129
      %v1131 = vpop.f32.mrf.mxu0
      %v1132 = vadd.f32 0.0, %v1131
      %1133 = vdwg.mxu0
      %1134 = vmatpush.msra.mxu0 0.0
      %1135 = vmatpush.msra.mxu0 0.0
      %1136 = vmatpush.msra.mxu0 0.0
      %1137 = vmatpush.msra.mxu0 0.0
      %1138 = vmatpush.msra.mxu0 0.0
      %1139 = vmatpush.msra.mxu0 0.0
      %1140 = vmatpush.msra.mxu0 0.0
      %1141 = vmatpush.msra.mxu0 0.0
      %1142 = vmatpush.msra.mxu0 0.0
      %1143 = vmatpush.msra.mxu0 0.0
      %v1144 = vand.u32 %v248, 4294901760
      %v1145 = vsub.f32 %v248, %v1144
      %v1146 = vand.u32 %v1145, 4294901760
      %v1147 = vsub.f32 %v1145, %v1146
      %v1148 = vand.u32 %v1147, 4294901760
      %1149 = vmatpush.msra.mxu0 %v1148
      %v1150 = vand.u32 %v247, 4294901760
      %v1151 = vsub.f32 %v247, %v1150
      %v1152 = vand.u32 %v1151, 4294901760
      %v1153 = vsub.f32 %v1151, %v1152
      %v1154 = vand.u32 %v1153, 4294901760
      %1155 = vmatpush.msra.mxu0 %v1154
      %v1156 = vand.u32 %v246, 4294901760
      %v1157 = vsub.f32 %v246, %v1156
      %v1158 = vand.u32 %v1157, 4294901760
      %v1159 = vsub.f32 %v1157, %v1158
      %v1160 = vand.u32 %v1159, 4294901760
      %1161 = vmatpush.msra.mxu0 %v1160
      %v1162 = vand.u32 %v245, 4294901760
      %v1163 = vsub.f32 %v245, %v1162
      %v1164 = vand.u32 %v1163, 4294901760
      %v1165 = vsub.f32 %v1163, %v1164
      %v1166 = vand.u32 %v1165, 4294901760
      %1167 = vmatpush.msra.mxu0 %v1166
      %v1168 = vand.u32 %v244, 4294901760
      %v1169 = vsub.f32 %v244, %v1168
      %v1170 = vand.u32 %v1169, 4294901760
      %v1171 = vsub.f32 %v1169, %v1170
      %v1172 = vand.u32 %v1171, 4294901760
      %1173 = vmatpush.msra.mxu0 %v1172
      %v1174 = vand.u32 %v243, 4294901760
      %v1175 = vsub.f32 %v243, %v1174
      %v1176 = vand.u32 %v1175, 4294901760
      %v1177 = vsub.f32 %v1175, %v1176
      %v1178 = vand.u32 %v1177, 4294901760
      %1179 = vmatpush.msra.mxu0 %v1178
      %v1180 = vand.u32 %v1090, 4294901760
      %1181 = vmatmul.f32.gmra.mxu0 %v1180
      %v1182 = vpop.f32.mrf.mxu0
      %v1183 = vadd.f32 %v1124, %v1182
      %v1184 = vand.u32 %v1093, 4294901760
      %1185 = vmatmul.f32.gmra.mxu0 %v1184
      %v1186 = vpop.f32.mrf.mxu0
      %v1187 = vadd.f32 %v1132, %v1186
      %1188 = vdwg.mxu0
      %1189 = vmatpush.msra.mxu0 0.0
      %1190 = vmatpush.msra.mxu0 0.0
      %1191 = vmatpush.msra.mxu0 0.0
      %1192 = vmatpush.msra.mxu0 0.0
      %1193 = vmatpush.msra.mxu0 0.0
      %1194 = vmatpush.msra.mxu0 0.0
      %1195 = vmatpush.msra.mxu0 0.0
      %1196 = vmatpush.msra.mxu0 0.0
      %1197 = vmatpush.msra.mxu0 0.0
      %1198 = vmatpush.msra.mxu0 0.0
      %v1199 = vand.u32 %v248, 4294901760
      %v1200 = vsub.f32 %v248, %v1199
      %1201 = vmatpush.msra.mxu0 %v1200
      %v1202 = vand.u32 %v247, 4294901760
      %v1203 = vsub.f32 %v247, %v1202
      %1204 = vmatpush.msra.mxu0 %v1203
      %v1205 = vand.u32 %v246, 4294901760
      %v1206 = vsub.f32 %v246, %v1205
      %1207 = vmatpush.msra.mxu0 %v1206
      %v1208 = vand.u32 %v245, 4294901760
      %v1209 = vsub.f32 %v245, %v1208
      %1210 = vmatpush.msra.mxu0 %v1209
      %v1211 = vand.u32 %v244, 4294901760
      %v1212 = vsub.f32 %v244, %v1211
      %1213 = vmatpush.msra.mxu0 %v1212
      %v1214 = vand.u32 %v243, 4294901760
      %v1215 = vsub.f32 %v243, %v1214
      %1216 = vmatpush.msra.mxu0 %v1215
      %v1217 = vand.u32 %v1090, 4294901760
      %v1218 = vsub.f32 %v1090, %v1217
      %1219 = vmatmul.f32.gmra.mxu0 %v1218
      %v1220 = vpop.f32.mrf.mxu0
      %v1221 = vadd.f32 %v1183, %v1220
      %v1222 = vand.u32 %v1093, 4294901760
      %v1223 = vsub.f32 %v1093, %v1222
      %1224 = vmatmul.f32.gmra.mxu0 %v1223
      %v1225 = vpop.f32.mrf.mxu0
      %v1226 = vadd.f32 %v1187, %v1225
      %1227 = vdwg.mxu0
      %1228 = vmatpush.msra.mxu0 0.0
      %1229 = vmatpush.msra.mxu0 0.0
      %1230 = vmatpush.msra.mxu0 0.0
      %1231 = vmatpush.msra.mxu0 0.0
      %1232 = vmatpush.msra.mxu0 0.0
      %1233 = vmatpush.msra.mxu0 0.0
      %1234 = vmatpush.msra.mxu0 0.0
      %1235 = vmatpush.msra.mxu0 0.0
      %1236 = vmatpush.msra.mxu0 0.0
      %1237 = vmatpush.msra.mxu0 0.0
      %v1238 = vand.u32 %v248, 4294901760
      %1239 = vmatpush.msra.mxu0 %v1238
      %v1240 = vand.u32 %v247, 4294901760
      %1241 = vmatpush.msra.mxu0 %v1240
      %v1242 = vand.u32 %v246, 4294901760
      %1243 = vmatpush.msra.mxu0 %v1242
      %v1244 = vand.u32 %v245, 4294901760
      %1245 = vmatpush.msra.mxu0 %v1244
      %v1246 = vand.u32 %v244, 4294901760
      %1247 = vmatpush.msra.mxu0 %v1246
      %v1248 = vand.u32 %v243, 4294901760
      %1249 = vmatpush.msra.mxu0 %v1248
      %v1250 = vand.u32 %v1090, 4294901760
      %v1251 = vsub.f32 %v1090, %v1250
      %v1252 = vand.u32 %v1251, 4294901760
      %1253 = vmatmul.f32.gmra.mxu0 %v1252
      %v1254 = vpop.f32.mrf.mxu0
      %v1255 = vadd.f32 %v1221, %v1254
      %v1256 = vand.u32 %v1093, 4294901760
      %v1257 = vsub.f32 %v1093, %v1256
      %v1258 = vand.u32 %v1257, 4294901760
      %1259 = vmatmul.f32.gmra.mxu0 %v1258
      %v1260 = vpop.f32.mrf.mxu0
      %v1261 = vadd.f32 %v1226, %v1260
      %1262 = vdwg.mxu0
      %1263 = vmatpush.msra.mxu0 0.0
      %1264 = vmatpush.msra.mxu0 0.0
      %1265 = vmatpush.msra.mxu0 0.0
      %1266 = vmatpush.msra.mxu0 0.0
      %1267 = vmatpush.msra.mxu0 0.0
      %1268 = vmatpush.msra.mxu0 0.0
      %1269 = vmatpush.msra.mxu0 0.0
      %1270 = vmatpush.msra.mxu0 0.0
      %1271 = vmatpush.msra.mxu0 0.0
      %1272 = vmatpush.msra.mxu0 0.0
      %v1273 = vand.u32 %v248, 4294901760
      %v1274 = vsub.f32 %v248, %v1273
      %v1275 = vand.u32 %v1274, 4294901760
      %1276 = vmatpush.msra.mxu0 %v1275
      %v1277 = vand.u32 %v247, 4294901760
      %v1278 = vsub.f32 %v247, %v1277
      %v1279 = vand.u32 %v1278, 4294901760
      %1280 = vmatpush.msra.mxu0 %v1279
      %v1281 = vand.u32 %v246, 4294901760
      %v1282 = vsub.f32 %v246, %v1281
      %v1283 = vand.u32 %v1282, 4294901760
      %1284 = vmatpush.msra.mxu0 %v1283
      %v1285 = vand.u32 %v245, 4294901760
      %v1286 = vsub.f32 %v245, %v1285
      %v1287 = vand.u32 %v1286, 4294901760
      %1288 = vmatpush.msra.mxu0 %v1287
      %v1289 = vand.u32 %v244, 4294901760
      %v1290 = vsub.f32 %v244, %v1289
      %v1291 = vand.u32 %v1290, 4294901760
      %1292 = vmatpush.msra.mxu0 %v1291
      %v1293 = vand.u32 %v243, 4294901760
      %v1294 = vsub.f32 %v243, %v1293
      %v1295 = vand.u32 %v1294, 4294901760
      %1296 = vmatpush.msra.mxu0 %v1295
      %v1297 = vand.u32 %v1090, 4294901760
      %1298 = vmatmul.f32.gmra.mxu0 %v1297
      %v1299 = vpop.f32.mrf.mxu0
      %v1300 = vadd.f32 %v1255, %v1299
      %v1301 = vand.u32 %v1093, 4294901760
      %1302 = vmatmul.f32.gmra.mxu0 %v1301
      %v1303 = vpop.f32.mrf.mxu0
      %v1304 = vadd.f32 %v1261, %v1303
      %1305 = vdwg.mxu0
      %1306 = vmatpush.msra.mxu0 0.0
      %1307 = vmatpush.msra.mxu0 0.0
      %1308 = vmatpush.msra.mxu0 0.0
      %1309 = vmatpush.msra.mxu0 0.0
      %1310 = vmatpush.msra.mxu0 0.0
      %1311 = vmatpush.msra.mxu0 0.0
      %1312 = vmatpush.msra.mxu0 0.0
      %1313 = vmatpush.msra.mxu0 0.0
      %1314 = vmatpush.msra.mxu0 0.0
      %1315 = vmatpush.msra.mxu0 0.0
      %v1316 = vand.u32 %v248, 4294901760
      %1317 = vmatpush.msra.mxu0 %v1316
      %v1318 = vand.u32 %v247, 4294901760
      %1319 = vmatpush.msra.mxu0 %v1318
      %v1320 = vand.u32 %v246, 4294901760
      %1321 = vmatpush.msra.mxu0 %v1320
      %v1322 = vand.u32 %v245, 4294901760
      %1323 = vmatpush.msra.mxu0 %v1322
      %v1324 = vand.u32 %v244, 4294901760
      %1325 = vmatpush.msra.mxu0 %v1324
      %v1326 = vand.u32 %v243, 4294901760
      %1327 = vmatpush.msra.mxu0 %v1326
      %v1328 = vand.u32 %v1090, 4294901760
      %1329 = vmatmul.f32.gmra.mxu0 %v1328
      %v1330 = vpop.f32.mrf.mxu0
      %v1331 = vadd.f32 %v1300, %v1330
      %v1332 = vand.u32 %v1093, 4294901760
      %1333 = vmatmul.f32.gmra.mxu0 %v1332
      %v1334 = vpop.f32.mrf.mxu0
      %v1335 = vadd.f32 %v1304, %v1334
      %1336 = vdwg.mxu0
      %v1337 = vmul.f32 %v1331, %v524
      %v1338 = vmul.f32 %v1335, %v524
      %1339 = vadd.xlane.f32.xlu0 %v1337
      %v1340 = vpop.xlane.xlu0 %1339
      %1341 = vadd.xlane.f32.xlu0 %v1338
      %v1342 = vpop.xlane.xlu0 %1341
      %v1343 = vadd.f32 %v1340, %v532
      %v1344 = vadd.f32 %v1342, %v532
      %v1345 = vmul.f32 %v1343, %v260
      %v1346 = vmul.f32 %v1344, %v261
      %1349 = vrot.lane.b32.xlu0 %v805, 127
      %v1350 = vpop.permute.xlu0 %1349
      %1351 = vrot.lane.b32.xlu0 %v806, 127
      %v1352 = vpop.permute.xlu0 %1351
      %v1355 = vmax.f32 %v535, %v1350
      %v1356 = vmax.f32 %v536, %v1352
      %1359 = vrot.lane.b32.xlu0 %v1075, 126
      %v1360 = vpop.permute.xlu0 %1359
      %1361 = vrot.lane.b32.xlu0 %v1076, 126
      %v1362 = vpop.permute.xlu0 %1361
      %v1365 = vmax.f32 %v1355, %v1360
      %v1366 = vmax.f32 %v1356, %v1362
      %1369 = vrot.lane.b32.xlu0 %v1345, 125
      %v1370 = vpop.permute.xlu0 %1369
      %1371 = vrot.lane.b32.xlu0 %v1346, 125
      %v1372 = vpop.permute.xlu0 %1371
      %v1375 = vmax.f32 %v1365, %v1370
      %v1376 = vmax.f32 %v1366, %v1372
      %v1377 = vsub.f32 %v535, %v1375
      %v1378 = vsub.f32 %v536, %v1376
      %v1379 = vmul.f32 %v1377, 1.442695
      %v1380 = vpow.pop %v1379
      %v1381 = vmul.f32 %v1378, 1.442695
      %v1382 = vpow.pop %v1381
      %1385 = vrot.lane.b32.xlu0 %v1375, 1
      %v1386 = vpop.permute.xlu0 %1385
      %1387 = vrot.lane.b32.xlu0 %v1376, 1
      %v1388 = vpop.permute.xlu0 %1387
      %v1391 = vsub.f32 %v805, %v1386
      %v1392 = vsub.f32 %v806, %v1388
      %v1393 = vmul.f32 %v1391, 1.442695
      %v1394 = vpow.pop %v1393
      %v1395 = vmul.f32 %v1392, 1.442695
      %v1396 = vpow.pop %v1395
      %1397 = vrot.lane.b32.xlu0 %v1375, 2
      %v1398 = vpop.permute.xlu0 %1397
      %1399 = vrot.lane.b32.xlu0 %v1376, 2
      %v1400 = vpop.permute.xlu0 %1399
      %v1403 = vsub.f32 %v1075, %v1398
      %v1404 = vsub.f32 %v1076, %v1400
      %v1405 = vmul.f32 %v1403, 1.442695
      %v1406 = vpow.pop %v1405
      %v1407 = vmul.f32 %v1404, 1.442695
      %v1408 = vpow.pop %v1407
      %1409 = vrot.lane.b32.xlu0 %v1375, 3
      %v1410 = vpop.permute.xlu0 %1409
      %1411 = vrot.lane.b32.xlu0 %v1376, 3
      %v1412 = vpop.permute.xlu0 %1411
      %v1415 = vsub.f32 %v1345, %v1410
      %v1416 = vsub.f32 %v1346, %v1412
      %v1417 = vmul.f32 %v1415, 1.442695
      %v1418 = vpow.pop %v1417
      %v1419 = vmul.f32 %v1416, 1.442695
      %v1420 = vpow.pop %v1419
      %1423 = vrot.lane.b32.xlu0 %v1394, 127
      %v1424 = vpop.permute.xlu0 %1423
      %1425 = vrot.lane.b32.xlu0 %v1396, 127
      %v1426 = vpop.permute.xlu0 %1425
      %v1429 = vadd.f32 %v1380, %v1424
      %v1430 = vadd.f32 %v1382, %v1426
      %1433 = vrot.lane.b32.xlu0 %v1406, 126
      %v1434 = vpop.permute.xlu0 %1433
      %1435 = vrot.lane.b32.xlu0 %v1408, 126
      %v1436 = vpop.permute.xlu0 %1435
      %v1439 = vadd.f32 %v1429, %v1434
      %v1440 = vadd.f32 %v1430, %v1436
      %1443 = vrot.lane.b32.xlu0 %v1418, 125
      %v1444 = vpop.permute.xlu0 %1443
      %1445 = vrot.lane.b32.xlu0 %v1420, 125
      %v1446 = vpop.permute.xlu0 %1445
      %v1449 = vadd.f32 %v1439, %v1444
      %v1450 = vadd.f32 %v1440, %v1446
      %v1451 = vrcp.pop %v1449
      %v1452 = vrcp.pop %v1450
      %v1453 = vmul.f32 %v1380, %v1451
      %v1454 = vmul.f32 %v1382, %v1452
      %v1455 = vmul.f32 %v1453, %v260
      %v1456 = vmul.f32 %v1454, %v261
      %1459 = vrot.lane.b32.xlu0 %v1451, 1
      %v1460 = vpop.permute.xlu0 %1459
      %1461 = vrot.lane.b32.xlu0 %v1452, 1
      %v1462 = vpop.permute.xlu0 %1461
      %v1465 = vmul.f32 %v1394, %v1460
      %v1466 = vmul.f32 %v1396, %v1462
      %v1467 = vmul.f32 %v1465, %v260
      %v1468 = vmul.f32 %v1466, %v261
      %1469 = vrot.lane.b32.xlu0 %v1451, 2
      %v1470 = vpop.permute.xlu0 %1469
      %1471 = vrot.lane.b32.xlu0 %v1452, 2
      %v1472 = vpop.permute.xlu0 %1471
      %v1475 = vmul.f32 %v1406, %v1470
      %v1476 = vmul.f32 %v1408, %v1472
      %v1477 = vmul.f32 %v1475, %v260
      %v1478 = vmul.f32 %v1476, %v261
      %1479 = vrot.lane.b32.xlu0 %v1451, 3
      %v1480 = vpop.permute.xlu0 %1479
      %1481 = vrot.lane.b32.xlu0 %v1452, 3
      %v1482 = vpop.permute.xlu0 %1481
      %v1485 = vmul.f32 %v1418, %v1480
      %v1486 = vmul.f32 %v1420, %v1482
      %v1487 = vmul.f32 %v1485, %v260
      %v1488 = vmul.f32 %v1486, %v261
      %1491 = vrot.lane.b32.xlu0 %v1467, 127
      %v1492 = vpop.permute.xlu0 %1491
      %1493 = vrot.lane.b32.xlu0 %v1468, 127
      %v1494 = vpop.permute.xlu0 %1493
      %v1497 = vadd.f32 %v1455, %v1492
      %v1498 = vadd.f32 %v1456, %v1494
      %1501 = vrot.lane.b32.xlu0 %v1477, 126
      %v1502 = vpop.permute.xlu0 %1501
      %1503 = vrot.lane.b32.xlu0 %v1478, 126
      %v1504 = vpop.permute.xlu0 %1503
      %v1507 = vadd.f32 %v1497, %v1502
      %v1508 = vadd.f32 %v1498, %v1504
      %1511 = vrot.lane.b32.xlu0 %v1487, 125
      %v1512 = vpop.permute.xlu0 %1511
      %1513 = vrot.lane.b32.xlu0 %v1488, 125
      %v1514 = vpop.permute.xlu0 %1513
      %v1517 = vadd.f32 %v1507, %v1512
      %v1518 = vadd.f32 %v1508, %v1514
      %v1519 = vadd.f32 %v1517, 1e-13
      %v1520 = vadd.f32 %v1518, 1e-13
      %v1521 = vrcp.pop %v1519
      %v1522 = vrcp.pop %v1520
      %v1523 = vmul.f32 %v1455, %v1521
      %v1524 = vmul.f32 %v1456, %v1522
      %1526 = vset.pattern.permute.xlu0 0
      %1527 = vperm.xlu0 %1526, %v1523
      %v1528 = vpop.permute.xlu0 %1527
      %1531 = vset.pattern.permute.xlu0 0
      %1532 = vperm.xlu0 %1531, %v1524
      %v1533 = vpop.permute.xlu0 %1532
      %v1535 = vmul.f32 %v1528, %v517
      %v1536 = vmul.f32 %v1533, %v521
      %1539 = vrot.lane.b32.xlu0 %v1521, 1
      %v1540 = vpop.permute.xlu0 %1539
      %1541 = vrot.lane.b32.xlu0 %v1522, 1
      %v1542 = vpop.permute.xlu0 %1541
      %v1545 = vmul.f32 %v1467, %v1540
      %v1546 = vmul.f32 %v1468, %v1542
      %1548 = vset.pattern.permute.xlu0 1
      %1549 = vperm.xlu0 %1548, %v1545
      %v1550 = vpop.permute.xlu0 %1549
      %1553 = vset.pattern.permute.xlu0 1
      %1554 = vperm.xlu0 %1553, %v1546
      %v1555 = vpop.permute.xlu0 %1554
      %v1557 = vmul.f32 %v1550, %v791
      %v1558 = vmul.f32 %v1555, %v795
      %v1559 = vadd.f32 %v1535, %v1557
      %v1560 = vadd.f32 %v1536, %v1558
      %1561 = vrot.lane.b32.xlu0 %v1521, 2
      %v1562 = vpop.permute.xlu0 %1561
      %1563 = vrot.lane.b32.xlu0 %v1522, 2
      %v1564 = vpop.permute.xlu0 %1563
      %v1567 = vmul.f32 %v1477, %v1562
      %v1568 = vmul.f32 %v1478, %v1564
      %1570 = vset.pattern.permute.xlu0 2
      %1571 = vperm.xlu0 %1570, %v1567
      %v1572 = vpop.permute.xlu0 %1571
      %1575 = vset.pattern.permute.xlu0 2
      %1576 = vperm.xlu0 %1575, %v1568
      %v1577 = vpop.permute.xlu0 %1576
      %v1579 = vmul.f32 %v1572, %v1061
      %v1580 = vmul.f32 %v1577, %v1065
      %v1581 = vadd.f32 %v1559, %v1579
      %v1582 = vadd.f32 %v1560, %v1580
      %1583 = vrot.lane.b32.xlu0 %v1521, 3
      %v1584 = vpop.permute.xlu0 %1583
      %1585 = vrot.lane.b32.xlu0 %v1522, 3
      %v1586 = vpop.permute.xlu0 %1585
      %v1589 = vmul.f32 %v1487, %v1584
      %v1590 = vmul.f32 %v1488, %v1586
      %1592 = vset.pattern.permute.xlu0 3
      %1593 = vperm.xlu0 %1592, %v1589
      %v1594 = vpop.permute.xlu0 %1593
      %1597 = vset.pattern.permute.xlu0 3
      %1598 = vperm.xlu0 %1597, %v1590
      %v1599 = vpop.permute.xlu0 %1598
      %v1601 = vmul.f32 %v1594, %v1331
      %v1602 = vmul.f32 %v1599, %v1335
      %v1603 = vadd.f32 %v1581, %v1601
      %v1604 = vadd.f32 %v1582, %v1602
      %1605 = vst [vmem:[%s240] sm:$0xff] %v1603
      %1606 = vst [vmem:[%s240 + $0x8] sm:$0xff] %v1604
      %s1607 = smul.u32 2, %s21
      %p1608 = scmp.lt.s32.totalorder %s20, 1
      %s1609 = scalar_select %p1608, %s20, 1
      %p1610 = scmp.lt.s32.totalorder %s1607, 1
      %s1611 = scalar_select %p1610, %s1607, 1
      %s1612 = smul.addr %s1609, 2
      %s1613 = sadd.s32 %s1611, %s1612
      %s1614 = smul.addr %s1613, 8
      %s1615 = scalar_lea.vmem %s4, %s1614
      // Predicated region
      $region37: #{_lambda_.1} parent=35 // pred_check
        %p1616 = pneg %p142
      $region38: #{_lambda_.1} parent=35 // pred_check_branch
        %1618 = sbr.rel (%p1616) target = $region40
      $region39: #{_lambda_.1} parent=35 // pred_region
        %s1619 = smul.u32 2, %s21
      $region40: #{_lambda_.1} parent=35 // pred_fallthru
        _
    $region36: #{_lambda_.1} parent=5 // pred_fallthru
      _
    %p1620 = scmp.le.s32.totalorder 2, %s11
    // Predicated region
    $region41: #{_lambda_.1} parent=5 // pred_check
      %p1621 = pneg %p1620
    $region42: #{_lambda_.1} parent=5 // pred_check_branch
      %1623 = sbr.rel (%p1621) target = $region44
    $region43: #{_lambda_.1} parent=5 // pred_region
      %s1624 = ssub.s32 %s11, 2
      // Predicated region
      $region45: #{_lambda_.1} parent=43 // pred_check
        %p1625 = pneg %p148
      $region46: #{_lambda_.1} parent=43 // pred_check_branch
        %1627 = sbr.rel (%p1625) target = $region48
      $region47: #{_lambda_.1} parent=43 // pred_region
        %s1628 = smul.u32 2, %s23
        %p1629 = scmp.lt.s32.totalorder %s22, 1
        %s1630 = scalar_select %p1629, %s22, 1
        %p1631 = scmp.lt.s32.totalorder %s1628, 1
        %s1632 = scalar_select %p1631, %s1628, 1
        %s1633 = smul.addr %s1630, 2
        %s1634 = sadd.s32 %s1632, %s1633
        %s1635 = smul.addr %s1634, 8
        %s1636 = scalar_lea.vmem %s4, %s1635
      $region48: #{_lambda_.1} parent=43 // pred_fallthru
        _
    $region44: #{_lambda_.1} parent=5 // pred_fallthru
      _
  $region6: #{_lambda_.1} parent=0 // loop_footer
    %s15 = sadd.s32 1, %s11
  $region7: #{_lambda_.1} parent=0 // loop_footer_branch
    %10 = sbr.rel target = $region3
  $region8: #{_lambda_.1} parent=0 // loop_exit
    _

</llo_original>
